<compile_context>
chip_gen: v7x
topology: tpu7x:2x2x1
jax: 0.10.0
libtpu: 0.0.40
codegen_flags: <defaults>
</compile_context>

<pallas_src>
import jax
import jax.numpy as jnp
from jax import lax
from jax.experimental import pallas as pl
from jax.experimental.pallas import tpu as pltpu

EMBED_DIM = 20
RNN_HIDDEN = 64
FC_HIDDEN = 64
VOCAB_SIZE = 100  # TODO(synk): real vocab came from a .pth file; synthesized here.


def rnn_kernel(lens_ref,   # (Bp, 1) int32   per-row sequence lengths
               x_ref,      # (T*Bp, E) bf16  time-major embedded tokens
               wih_ref,    # (E, 4H) bf16    LSTM input weights^T, gate order i,f,o,g
               whh_ref,    # (H, 4H) bf16    LSTM hidden weights^T, gate order i,f,o,g
               b_ref,      # (1, 4H) f32     b_ih + b_hh, gate order i,f,o,g
               w1_ref, b1_ref,   # (H, FC) bf16, (1, FC) f32
               w2_ref, b2_ref,   # (FC, FC) bf16, (1, FC) f32
               w3_ref, b3_ref,   # (FC, 1) bf16, (1, 1) f32
               out_ref,    # (Bp, 1) f32
               gates_scr,  # (T*Bp, 4H) f32  hoisted input projection
               h_scr, c_scr, hlast_scr):   # (Bp, H) f32 scratch
    Bp, H = h_scr.shape
    T = x_ref.shape[0] // Bp

    # Hoisted input projection + bias: one big bf16 MXU matmul, off the serial path.
    gates_scr[...] = (
        jnp.dot(x_ref[...], wih_ref[...], preferred_element_type=jnp.float32)
        + b_ref[...])

    h_scr[...] = jnp.zeros_like(h_scr)
    c_scr[...] = jnp.zeros_like(c_scr)
    hlast_scr[...] = jnp.zeros_like(hlast_scr)

    lens_m1 = lens_ref[...] - 1            # (Bp, 1), computed once before the loop
    whh = whh_ref[...]                     # keep hidden weights resident across steps

    def step(t, carry):
        base = pl.multiple_of(t * Bp, Bp)
        gates = (gates_scr[pl.ds(base, Bp), :]
                 + jnp.dot(h_scr[...].astype(jnp.bfloat16), whh,
                           preferred_element_type=jnp.float32))     # (Bp, 4H) f32
        ifo = jax.nn.sigmoid(gates[:, :3 * H])    # one EUP call over contiguous 3H
        g_g = jnp.tanh(gates[:, 3 * H:])          # one EUP call over the last H
        i_g = ifo[:, 0 * H:1 * H]
        f_g = ifo[:, 1 * H:2 * H]
        o_g = ifo[:, 2 * H:3 * H]
        c_new = f_g * c_scr[...] + i_g * g_g      # elementwise kept in f32 (v5e-safe)
        h_new = o_g * jnp.tanh(c_new)
        c_scr[...] = c_new
        h_scr[...] = h_new
        # pack_padded_sequence semantics: final hidden = h at t == len-1 per row.
        hlast_scr[...] = jnp.where(lens_m1 == t, h_new, hlast_scr[...])
        return carry

    # Fully unrolled so the scheduler can overlap EUP/VPU work of step t with
    # the MXU push of step t+1 (T is small and static here).
    lax.fori_loop(0, T, step, 0, unroll=True)

    h = hlast_scr[...].astype(jnp.bfloat16)                                   # (Bp, H)
    y1 = jnp.maximum(jnp.dot(h, w1_ref[...], preferred_element_type=jnp.float32)
                     + b1_ref[...], 0.0)                                      # fc1+relu
    # dropout1: identity (eval mode)
    y2 = jnp.maximum(jnp.dot(y1.astype(jnp.bfloat16), w2_ref[...],
                             preferred_element_type=jnp.float32)
                     + b2_ref[...], 0.0)                                      # fc2+relu
    # dropout2: identity (eval mode)
    y3 = (jnp.dot(y2.astype(jnp.bfloat16), w3_ref[...],
                  preferred_element_type=jnp.float32) + b3_ref[...])
    out_ref[...] = jax.nn.sigmoid(y3)                                         # (Bp, 1)


def make_params(key):
    H, E, FC = RNN_HIDDEN, EMBED_DIM, FC_HIDDEN
    ks = jax.random.split(key, 10)
    s = 1.0 / jnp.sqrt(H)
    emb = jax.random.normal(ks[0], (VOCAB_SIZE, E), jnp.float32) * 0.1
    emb = emb.at[0].set(0.0)                       # padding_idx=0
    w_ih = jax.random.uniform(ks[1], (4 * H, E), jnp.float32, -s, s)
    w_hh = jax.random.uniform(ks[2], (4 * H, H), jnp.float32, -s, s)
    b_ih = jax.random.uniform(ks[3], (4 * H,), jnp.float32, -s, s)
    b_hh = jax.random.uniform(ks[4], (4 * H,), jnp.float32, -s, s)
    w1 = jax.random.uniform(ks[5], (FC, H), jnp.float32, -s, s)
    b1 = jax.random.uniform(ks[6], (FC,), jnp.float32, -s, s)
    w2 = jax.random.uniform(ks[7], (FC, FC), jnp.float32, -s, s)
    b2 = jax.random.uniform(ks[8], (FC,), jnp.float32, -s, s)
    w3 = jax.random.uniform(ks[9], (1, FC), jnp.float32, -s, s)
    b3 = jnp.zeros((1,), jnp.float32)
    return dict(emb=emb, w_ih=w_ih, w_hh=w_hh, b_ih=b_ih, b_hh=b_hh,
                w1=w1, b1=b1, w2=w2, b2=b2, w3=w3, b3=b3)


def rnn_forward(params, text, lengths):
    """text: (B, T) int32, lengths: (B,) int32 -> (B, 1) f32 probabilities."""
    B, T = text.shape
    H, E, FC = RNN_HIDDEN, EMBED_DIM, FC_HIDDEN

    # Pad batch to a sublane multiple (8) so vregs / MXU rows aren't mostly masked.
    Bp = max(8, ((B + 7) // 8) * 8)
    text_p = jnp.zeros((Bp, T), jnp.int32).at[:B].set(text)
    lens_p = jnp.ones((Bp,), jnp.int32).at[:B].set(lengths.astype(jnp.int32))

    # Embedding lookup (glue, plain JAX gather) -> time-major, flattened, bf16.
    x = params["emb"][text_p]                                      # (Bp, T, E)
    x = jnp.transpose(x, (1, 0, 2)).reshape(T * Bp, E).astype(jnp.bfloat16)

    # Reorder LSTM gates from PyTorch's [i, f, g, o] to [i, f, o, g] so the kernel
    # can run one sigmoid over a contiguous 3H slice.
    perm = jnp.concatenate([jnp.arange(0, H), jnp.arange(H, 2 * H),
                            jnp.arange(3 * H, 4 * H), jnp.arange(2 * H, 3 * H)])
    w_ih = params["w_ih"][perm].T.astype(jnp.bfloat16)             # (E, 4H)
    w_hh = params["w_hh"][perm].T.astype(jnp.bfloat16)             # (H, 4H)
    b = (params["b_ih"] + params["b_hh"])[perm].reshape(1, 4 * H)  # f32

    args = (
        lens_p.reshape(Bp, 1),
        x,
        w_ih, w_hh, b,
        params["w1"].T.astype(jnp.bfloat16), params["b1"].reshape(1, FC),
        params["w2"].T.astype(jnp.bfloat16), params["b2"].reshape(1, FC),
        params["w3"].T.astype(jnp.bfloat16), params["b3"].reshape(1, 1),
    )

    vmem = pl.BlockSpec(memory_space=pltpu.MemorySpace.VMEM)
    # TODO(synk): for production-sized T/B, tile the time axis (grid with carried
    # h/c scratch, FC head under pl.when on the last step) so x never has to be
    # fully VMEM-resident (v7x has only 64 MiB VMEM), and add a parallel batch
    # grid axis for v7x's two TensorCores.
    out = pl.pallas_call(
        rnn_kernel,
        out_shape=jax.ShapeDtypeStruct((Bp, 1), jnp.float32),
        in_specs=[vmem] * len(args),
        out_specs=vmem,
        scratch_shapes=[
            pltpu.VMEM((T * Bp, 4 * H), jnp.float32),   # hoisted input-projection gates
            pltpu.VMEM((Bp, H), jnp.float32),           # h
            pltpu.VMEM((Bp, H), jnp.float32),           # c
            pltpu.VMEM((Bp, H), jnp.float32),           # h at last valid step
        ],
    )(*args)
    return out[:B]


if __name__ == "__main__":
    key = jax.random.PRNGKey(0)
    pkey, tkey = jax.random.split(key)
    params = make_params(pkey)

    B, T = 2, 8
    text = jax.random.randint(tkey, (B, T), 1, VOCAB_SIZE, dtype=jnp.int32)
    lengths = jnp.array([8, 5], dtype=jnp.int32)
    # zero out padded positions (token id 0 = padding)
    pos = jnp.arange(T)[None, :]
    text = jnp.where(pos < lengths[:, None], text, 0)

    out = rnn_forward(params, text, lengths)
    out = jax.block_until_ready(out)
    assert out.shape == (B, 1)
    assert bool(jnp.all(jnp.isfinite(out)))
    print("KERNEL_OK")
</pallas_src>

<mosaic_0001>
module attributes {stable_mosaic.version = 11 : i64} {
  func.func @rnn_kernel(%arg0: memref<8x1xi32, #tpu.memory_space<vmem>>, %arg1: memref<64x20xbf16, #tpu.memory_space<vmem>>, %arg2: memref<20x256xbf16, #tpu.memory_space<vmem>>, %arg3: memref<64x256xbf16, #tpu.memory_space<vmem>>, %arg4: memref<1x256xf32, #tpu.memory_space<vmem>>, %arg5: memref<64x64xbf16, #tpu.memory_space<vmem>>, %arg6: memref<1x64xf32, #tpu.memory_space<vmem>>, %arg7: memref<64x64xbf16, #tpu.memory_space<vmem>>, %arg8: memref<1x64xf32, #tpu.memory_space<vmem>>, %arg9: memref<64x1xbf16, #tpu.memory_space<vmem>>, %arg10: memref<1x1xf32, #tpu.memory_space<vmem>>, %arg11: memref<8x1xf32, #tpu.memory_space<vmem>>, %arg12: memref<64x256xf32, #tpu.memory_space<vmem>>, %arg13: memref<8x64xf32, #tpu.memory_space<vmem>>, %arg14: memref<8x64xf32, #tpu.memory_space<vmem>>, %arg15: memref<8x64xf32, #tpu.memory_space<vmem>>) attributes {dimension_semantics = [], scalar_prefetch = 0 : i64, scratch_operands = 4 : i64, tpu.core_type = #tpu.core_type<tc>} {
    %c0 = arith.constant 0 : index
    %c0_0 = arith.constant 0 : index
    %0 = vector.load %arg1[%c0, %c0_0] : memref<64x20xbf16, #tpu.memory_space<vmem>>, vector<64x20xbf16>
    %c0_1 = arith.constant 0 : index
    %c0_2 = arith.constant 0 : index
    %1 = vector.load %arg2[%c0_1, %c0_2] : memref<20x256xbf16, #tpu.memory_space<vmem>>, vector<20x256xbf16>
    %cst = arith.constant dense<0.000000e+00> : vector<64x256xf32>
    %2 = tpu.matmul %0, %1, %cst {dimension_numbers = #tpu.dot_dimension_numbers<[1], [0], [0], [1], [0, 0, 1, 1], [], []>} : vector<64x20xbf16>, vector<20x256xbf16>, vector<64x256xf32> -> vector<64x256xf32>
    %c0_3 = arith.constant 0 : index
    %c0_4 = arith.constant 0 : index
    %3 = vector.load %arg4[%c0_3, %c0_4] : memref<1x256xf32, #tpu.memory_space<vmem>>, vector<1x256xf32>
    %4 = vector.broadcast %3 : vector<1x256xf32> to vector<64x256xf32>
    %5 = arith.addf %2, %4 : vector<64x256xf32>
    %c0_5 = arith.constant 0 : index
    %c0_6 = arith.constant 0 : index
    %6 = vector.load %arg12[%c0_5, %c0_6] : memref<64x256xf32, #tpu.memory_space<vmem>>, vector<64x256xf32>
    tpu.vector_store %arg12[%c0_5, %c0_6], %5 {strides = array<i32>} : memref<64x256xf32, #tpu.memory_space<vmem>>, vector<64x256xf32>,
    %cst_7 = arith.constant 0.000000e+00 : f32
    %7 = vector.broadcast %cst_7 : f32 to vector<8x64xf32>
    %c0_8 = arith.constant 0 : index
    %c0_9 = arith.constant 0 : index
    %8 = vector.load %arg13[%c0_8, %c0_9] : memref<8x64xf32, #tpu.memory_space<vmem>>, vector<8x64xf32>
    tpu.vector_store %arg13[%c0_8, %c0_9], %7 {strides = array<i32>} : memref<8x64xf32, #tpu.memory_space<vmem>>, vector<8x64xf32>,
    %cst_10 = arith.constant 0.000000e+00 : f32
    %9 = vector.broadcast %cst_10 : f32 to vector<8x64xf32>
    %c0_11 = arith.constant 0 : index
    %c0_12 = arith.constant 0 : index
    %10 = vector.load %arg14[%c0_11, %c0_12] : memref<8x64xf32, #tpu.memory_space<vmem>>, vector<8x64xf32>
    tpu.vector_store %arg14[%c0_11, %c0_12], %9 {strides = array<i32>} : memref<8x64xf32, #tpu.memory_space<vmem>>, vector<8x64xf32>,
    %cst_13 = arith.constant 0.000000e+00 : f32
    %11 = vector.broadcast %cst_13 : f32 to vector<8x64xf32>
    %c0_14 = arith.constant 0 : index
    %c0_15 = arith.constant 0 : index
    %12 = vector.load %arg15[%c0_14, %c0_15] : memref<8x64xf32, #tpu.memory_space<vmem>>, vector<8x64xf32>
    tpu.vector_store %arg15[%c0_14, %c0_15], %11 {strides = array<i32>} : memref<8x64xf32, #tpu.memory_space<vmem>>, vector<8x64xf32>,
    %c0_16 = arith.constant 0 : index
    %c0_17 = arith.constant 0 : index
    %13 = vector.load %arg0[%c0_16, %c0_17] : memref<8x1xi32, #tpu.memory_space<vmem>>, vector<8x1xi32>
    %c1_i32 = arith.constant 1 : i32
    %14 = vector.broadcast %c1_i32 : i32 to vector<8x1xi32>
    %15 = arith.subi %13, %14 : vector<8x1xi32>
    %c0_18 = arith.constant 0 : index
    %c0_19 = arith.constant 0 : index
    %16 = vector.load %arg3[%c0_18, %c0_19] : memref<64x256xbf16, #tpu.memory_space<vmem>>, vector<64x256xbf16>
    %c0_i32 = arith.constant 0 : i32
    %c8_i32 = arith.constant 8 : i32
    %17 = arith.muli %c0_i32, %c8_i32 : i32
    %18 = tpu.assume_multiple %17, 8 : i32
    %19 = arith.index_cast %18 : i32 to index
    %c0_20 = arith.constant 0 : index
    %20 = vector.load %arg12[%19, %c0_20] : memref<64x256xf32, #tpu.memory_space<vmem>>, vector<8x256xf32>
    %c0_21 = arith.constant 0 : index
    %c0_22 = arith.constant 0 : index
    %21 = vector.load %arg13[%c0_21, %c0_22] : memref<8x64xf32, #tpu.memory_space<vmem>>, vector<8x64xf32>
    %22 = arith.truncf %21 : vector<8x64xf32> to vector<8x64xbf16>
    %cst_23 = arith.constant dense<0.000000e+00> : vector<8x256xf32>
    %23 = tpu.matmul %22, %16, %cst_23 {dimension_numbers = #tpu.dot_dimension_numbers<[1], [0], [0], [1], [0, 0, 1, 1], [], []>} : vector<8x64xbf16>, vector<64x256xbf16>, vector<8x256xf32> -> vector<8x256xf32>
    %24 = arith.addf %20, %23 : vector<8x256xf32>
    %25 = vector.extract_strided_slice %24 {offsets = [0, 0], sizes = [8, 192], strides = [1, 1]} : vector<8x256xf32> to vector<8x192xf32>
    %26 = arith.negf %25 : vector<8x192xf32>
    %27 = math.exp %26 : vector<8x192xf32>
    %cst_24 = arith.constant 1.000000e+00 : f32
    %28 = vector.broadcast %cst_24 : f32 to vector<8x192xf32>
    %29 = arith.addf %28, %27 : vector<8x192xf32>
    %30 = arith.divf %28, %29 : vector<8x192xf32>
    %31 = vector.extract_strided_slice %24 {offsets = [0, 192], sizes = [8, 64], strides = [1, 1]} : vector<8x256xf32> to vector<8x64xf32>
    %32 = math.tanh %31 : vector<8x64xf32>
    %33 = vector.extract_strided_slice %30 {offsets = [0, 0], sizes = [8, 64], strides = [1, 1]} : vector<8x192xf32> to vector<8x64xf32>
    %34 = vector.extract_strided_slice %30 {offsets = [0, 64], sizes = [8, 64], strides = [1, 1]} : vector<8x192xf32> to vector<8x64xf32>
    %35 = vector.extract_strided_slice %30 {offsets = [0, 128], sizes = [8, 64], strides = [1, 1]} : vector<8x192xf32> to vector<8x64xf32>
    %c0_25 = arith.constant 0 : index
    %c0_26 = arith.constant 0 : index
    %36 = vector.load %arg14[%c0_25, %c0_26] : memref<8x64xf32, #tpu.memory_space<vmem>>, vector<8x64xf32>
    %37 = arith.mulf %34, %36 : vector<8x64xf32>
    %38 = arith.mulf %33, %32 : vector<8x64xf32>
    %39 = arith.addf %37, %38 : vector<8x64xf32>
    %40 = math.tanh %39 : vector<8x64xf32>
    %41 = arith.mulf %35, %40 : vector<8x64xf32>
    %c0_27 = arith.constant 0 : index
    %c0_28 = arith.constant 0 : index
    %42 = vector.load %arg14[%c0_27, %c0_28] : memref<8x64xf32, #tpu.memory_space<vmem>>, vector<8x64xf32>
    tpu.vector_store %arg14[%c0_27, %c0_28], %39 {strides = array<i32>} : memref<8x64xf32, #tpu.memory_space<vmem>>, vector<8x64xf32>,
    %c0_29 = arith.constant 0 : index
    %c0_30 = arith.constant 0 : index
    %43 = vector.load %arg13[%c0_29, %c0_30] : memref<8x64xf32, #tpu.memory_space<vmem>>, vector<8x64xf32>
    tpu.vector_store %arg13[%c0_29, %c0_30], %41 {strides = array<i32>} : memref<8x64xf32, #tpu.memory_space<vmem>>, vector<8x64xf32>,
    %44 = vector.broadcast %c0_i32 : i32 to vector<8x1xi32>
    %45 = arith.cmpi eq, %15, %44 : vector<8x1xi32>
    %c0_31 = arith.constant 0 : index
    %c0_32 = arith.constant 0 : index
    %46 = vector.load %arg15[%c0_31, %c0_32] : memref<8x64xf32, #tpu.memory_space<vmem>>, vector<8x64xf32>
    %47 = vector.shape_cast %45 : vector<8x1xi1> to vector<8x1xi1>
    %48 = vector.broadcast %47 : vector<8x1xi1> to vector<8x64xi1>
    %49 = arith.select %48, %41, %46 : vector<8x64xi1>, vector<8x64xf32>
    %c0_33 = arith.constant 0 : index
    %c0_34 = arith.constant 0 : index
    %50 = vector.load %arg15[%c0_33, %c0_34] : memref<8x64xf32, #tpu.memory_space<vmem>>, vector<8x64xf32>
    tpu.vector_store %arg15[%c0_33, %c0_34], %49 {strides = array<i32>} : memref<8x64xf32, #tpu.memory_space<vmem>>, vector<8x64xf32>,
    %c1_i32_35 = arith.constant 1 : i32
    %c8_i32_36 = arith.constant 8 : i32
    %51 = arith.muli %c1_i32_35, %c8_i32_36 : i32
    %52 = tpu.assume_multiple %51, 8 : i32
    %53 = arith.index_cast %52 : i32 to index
    %c0_37 = arith.constant 0 : index
    %54 = vector.load %arg12[%53, %c0_37] : memref<64x256xf32, #tpu.memory_space<vmem>>, vector<8x256xf32>
    %c0_38 = arith.constant 0 : index
    %c0_39 = arith.constant 0 : index
    %55 = vector.load %arg13[%c0_38, %c0_39] : memref<8x64xf32, #tpu.memory_space<vmem>>, vector<8x64xf32>
    %56 = arith.truncf %55 : vector<8x64xf32> to vector<8x64xbf16>
    %cst_40 = arith.constant dense<0.000000e+00> : vector<8x256xf32>
    %57 = tpu.matmul %56, %16, %cst_40 {dimension_numbers = #tpu.dot_dimension_numbers<[1], [0], [0], [1], [0, 0, 1, 1], [], []>} : vector<8x64xbf16>, vector<64x256xbf16>, vector<8x256xf32> -> vector<8x256xf32>
    %58 = arith.addf %54, %57 : vector<8x256xf32>
    %59 = vector.extract_strided_slice %58 {offsets = [0, 0], sizes = [8, 192], strides = [1, 1]} : vector<8x256xf32> to vector<8x192xf32>
    %60 = arith.negf %59 : vector<8x192xf32>
    %61 = math.exp %60 : vector<8x192xf32>
    %cst_41 = arith.constant 1.000000e+00 : f32
    %62 = vector.broadcast %cst_41 : f32 to vector<8x192xf32>
    %63 = arith.addf %62, %61 : vector<8x192xf32>
    %64 = arith.divf %62, %63 : vector<8x192xf32>
    %65 = vector.extract_strided_slice %58 {offsets = [0, 192], sizes = [8, 64], strides = [1, 1]} : vector<8x256xf32> to vector<8x64xf32>
    %66 = math.tanh %65 : vector<8x64xf32>
    %67 = vector.extract_strided_slice %64 {offsets = [0, 0], sizes = [8, 64], strides = [1, 1]} : vector<8x192xf32> to vector<8x64xf32>
    %68 = vector.extract_strided_slice %64 {offsets = [0, 64], sizes = [8, 64], strides = [1, 1]} : vector<8x192xf32> to vector<8x64xf32>
    %69 = vector.extract_strided_slice %64 {offsets = [0, 128], sizes = [8, 64], strides = [1, 1]} : vector<8x192xf32> to vector<8x64xf32>
    %c0_42 = arith.constant 0 : index
    %c0_43 = arith.constant 0 : index
    %70 = vector.load %arg14[%c0_42, %c0_43] : memref<8x64xf32, #tpu.memory_space<vmem>>, vector<8x64xf32>
    %71 = arith.mulf %68, %70 : vector<8x64xf32>
    %72 = arith.mulf %67, %66 : vector<8x64xf32>
    %73 = arith.addf %71, %72 : vector<8x64xf32>
    %74 = math.tanh %73 : vector<8x64xf32>
    %75 = arith.mulf %69, %74 : vector<8x64xf32>
    %c0_44 = arith.constant 0 : index
    %c0_45 = arith.constant 0 : index
    %76 = vector.load %arg14[%c0_44, %c0_45] : memref<8x64xf32, #tpu.memory_space<vmem>>, vector<8x64xf32>
    tpu.vector_store %arg14[%c0_44, %c0_45], %73 {strides = array<i32>} : memref<8x64xf32, #tpu.memory_space<vmem>>, vector<8x64xf32>,
    %c0_46 = arith.constant 0 : index
    %c0_47 = arith.constant 0 : index
    %77 = vector.load %arg13[%c0_46, %c0_47] : memref<8x64xf32, #tpu.memory_space<vmem>>, vector<8x64xf32>
    tpu.vector_store %arg13[%c0_46, %c0_47], %75 {strides = array<i32>} : memref<8x64xf32, #tpu.memory_space<vmem>>, vector<8x64xf32>,
    %78 = vector.broadcast %c1_i32_35 : i32 to vector<8x1xi32>
    %79 = arith.cmpi eq, %15, %78 : vector<8x1xi32>
    %c0_48 = arith.constant 0 : index
    %c0_49 = arith.constant 0 : index
    %80 = vector.load %arg15[%c0_48, %c0_49] : memref<8x64xf32, #tpu.memory_space<vmem>>, vector<8x64xf32>
    %81 = vector.shape_cast %79 : vector<8x1xi1> to vector<8x1xi1>
    %82 = vector.broadcast %81 : vector<8x1xi1> to vector<8x64xi1>
    %83 = arith.select %82, %75, %80 : vector<8x64xi1>, vector<8x64xf32>
    %c0_50 = arith.constant 0 : index
    %c0_51 = arith.constant 0 : index
    %84 = vector.load %arg15[%c0_50, %c0_51] : memref<8x64xf32, #tpu.memory_space<vmem>>, vector<8x64xf32>
    tpu.vector_store %arg15[%c0_50, %c0_51], %83 {strides = array<i32>} : memref<8x64xf32, #tpu.memory_space<vmem>>, vector<8x64xf32>,
    %c2_i32 = arith.constant 2 : i32
    %c8_i32_52 = arith.constant 8 : i32
    %85 = arith.muli %c2_i32, %c8_i32_52 : i32
    %86 = tpu.assume_multiple %85, 8 : i32
    %87 = arith.index_cast %86 : i32 to index
    %c0_53 = arith.constant 0 : index
    %88 = vector.load %arg12[%87, %c0_53] : memref<64x256xf32, #tpu.memory_space<vmem>>, vector<8x256xf32>
    %c0_54 = arith.constant 0 : index
    %c0_55 = arith.constant 0 : index
    %89 = vector.load %arg13[%c0_54, %c0_55] : memref<8x64xf32, #tpu.memory_space<vmem>>, vector<8x64xf32>
    %90 = arith.truncf %89 : vector<8x64xf32> to vector<8x64xbf16>
    %cst_56 = arith.constant dense<0.000000e+00> : vector<8x256xf32>
    %91 = tpu.matmul %90, %16, %cst_56 {dimension_numbers = #tpu.dot_dimension_numbers<[1], [0], [0], [1], [0, 0, 1, 1], [], []>} : vector<8x64xbf16>, vector<64x256xbf16>, vector<8x256xf32> -> vector<8x256xf32>
    %92 = arith.addf %88, %91 : vector<8x256xf32>
    %93 = vector.extract_strided_slice %92 {offsets = [0, 0], sizes = [8, 192], strides = [1, 1]} : vector<8x256xf32> to vector<8x192xf32>
    %94 = arith.negf %93 : vector<8x192xf32>
    %95 = math.exp %94 : vector<8x192xf32>
    %cst_57 = arith.constant 1.000000e+00 : f32
    %96 = vector.broadcast %cst_57 : f32 to vector<8x192xf32>
    %97 = arith.addf %96, %95 : vector<8x192xf32>
    %98 = arith.divf %96, %97 : vector<8x192xf32>
    %99 = vector.extract_strided_slice %92 {offsets = [0, 192], sizes = [8, 64], strides = [1, 1]} : vector<8x256xf32> to vector<8x64xf32>
    %100 = math.tanh %99 : vector<8x64xf32>
    %101 = vector.extract_strided_slice %98 {offsets = [0, 0], sizes = [8, 64], strides = [1, 1]} : vector<8x192xf32> to vector<8x64xf32>
    %102 = vector.extract_strided_slice %98 {offsets = [0, 64], sizes = [8, 64], strides = [1, 1]} : vector<8x192xf32> to vector<8x64xf32>
    %103 = vector.extract_strided_slice %98 {offsets = [0, 128], sizes = [8, 64], strides = [1, 1]} : vector<8x192xf32> to vector<8x64xf32>
    %c0_58 = arith.constant 0 : index
    %c0_59 = arith.constant 0 : index
    %104 = vector.load %arg14[%c0_58, %c0_59] : memref<8x64xf32, #tpu.memory_space<vmem>>, vector<8x64xf32>
    %105 = arith.mulf %102, %104 : vector<8x64xf32>
    %106 = arith.mulf %101, %100 : vector<8x64xf32>
    %107 = arith.addf %105, %106 : vector<8x64xf32>
    %108 = math.tanh %107 : vector<8x64xf32>
    %109 = arith.mulf %103, %108 : vector<8x64xf32>
    %c0_60 = arith.constant 0 : index
    %c0_61 = arith.constant 0 : index
    %110 = vector.load %arg14[%c0_60, %c0_61] : memref<8x64xf32, #tpu.memory_space<vmem>>, vector<8x64xf32>
    tpu.vector_store %arg14[%c0_60, %c0_61], %107 {strides = array<i32>} : memref<8x64xf32, #tpu.memory_space<vmem>>, vector<8x64xf32>,
    %c0_62 = arith.constant 0 : index
    %c0_63 = arith.constant 0 : index
    %111 = vector.load %arg13[%c0_62, %c0_63] : memref<8x64xf32, #tpu.memory_space<vmem>>, vector<8x64xf32>
    tpu.vector_store %arg13[%c0_62, %c0_63], %109 {strides = array<i32>} : memref<8x64xf32, #tpu.memory_space<vmem>>, vector<8x64xf32>,
    %112 = vector.broadcast %c2_i32 : i32 to vector<8x1xi32>
    %113 = arith.cmpi eq, %15, %112 : vector<8x1xi32>
    %c0_64 = arith.constant 0 : index
    %c0_65 = arith.constant 0 : index
    %114 = vector.load %arg15[%c0_64, %c0_65] : memref<8x64xf32, #tpu.memory_space<vmem>>, vector<8x64xf32>
    %115 = vector.shape_cast %113 : vector<8x1xi1> to vector<8x1xi1>
    %116 = vector.broadcast %115 : vector<8x1xi1> to vector<8x64xi1>
    %117 = arith.select %116, %109, %114 : vector<8x64xi1>, vector<8x64xf32>
    %c0_66 = arith.constant 0 : index
    %c0_67 = arith.constant 0 : index
    %118 = vector.load %arg15[%c0_66, %c0_67] : memref<8x64xf32, #tpu.memory_space<vmem>>, vector<8x64xf32>
    tpu.vector_store %arg15[%c0_66, %c0_67], %117 {strides = array<i32>} : memref<8x64xf32, #tpu.memory_space<vmem>>, vector<8x64xf32>,
    %c3_i32 = arith.constant 3 : i32
    %c8_i32_68 = arith.constant 8 : i32
    %119 = arith.muli %c3_i32, %c8_i32_68 : i32
    %120 = tpu.assume_multiple %119, 8 : i32
    %121 = arith.index_cast %120 : i32 to index
    %c0_69 = arith.constant 0 : index
    %122 = vector.load %arg12[%121, %c0_69] : memref<64x256xf32, #tpu.memory_space<vmem>>, vector<8x256xf32>
    %c0_70 = arith.constant 0 : index
    %c0_71 = arith.constant 0 : index
    %123 = vector.load %arg13[%c0_70, %c0_71] : memref<8x64xf32, #tpu.memory_space<vmem>>, vector<8x64xf32>
    %124 = arith.truncf %123 : vector<8x64xf32> to vector<8x64xbf16>
    %cst_72 = arith.constant dense<0.000000e+00> : vector<8x256xf32>
    %125 = tpu.matmul %124, %16, %cst_72 {dimension_numbers = #tpu.dot_dimension_numbers<[1], [0], [0], [1], [0, 0, 1, 1], [], []>} : vector<8x64xbf16>, vector<64x256xbf16>, vector<8x256xf32> -> vector<8x256xf32>
    %126 = arith.addf %122, %125 : vector<8x256xf32>
    %127 = vector.extract_strided_slice %126 {offsets = [0, 0], sizes = [8, 192], strides = [1, 1]} : vector<8x256xf32> to vector<8x192xf32>
    %128 = arith.negf %127 : vector<8x192xf32>
    %129 = math.exp %128 : vector<8x192xf32>
    %cst_73 = arith.constant 1.000000e+00 : f32
    %130 = vector.broadcast %cst_73 : f32 to vector<8x192xf32>
    %131 = arith.addf %130, %129 : vector<8x192xf32>
    %132 = arith.divf %130, %131 : vector<8x192xf32>
    %133 = vector.extract_strided_slice %126 {offsets = [0, 192], sizes = [8, 64], strides = [1, 1]} : vector<8x256xf32> to vector<8x64xf32>
    %134 = math.tanh %133 : vector<8x64xf32>
    %135 = vector.extract_strided_slice %132 {offsets = [0, 0], sizes = [8, 64], strides = [1, 1]} : vector<8x192xf32> to vector<8x64xf32>
    %136 = vector.extract_strided_slice %132 {offsets = [0, 64], sizes = [8, 64], strides = [1, 1]} : vector<8x192xf32> to vector<8x64xf32>
    %137 = vector.extract_strided_slice %132 {offsets = [0, 128], sizes = [8, 64], strides = [1, 1]} : vector<8x192xf32> to vector<8x64xf32>
    %c0_74 = arith.constant 0 : index
    %c0_75 = arith.constant 0 : index
    %138 = vector.load %arg14[%c0_74, %c0_75] : memref<8x64xf32, #tpu.memory_space<vmem>>, vector<8x64xf32>
    %139 = arith.mulf %136, %138 : vector<8x64xf32>
    %140 = arith.mulf %135, %134 : vector<8x64xf32>
    %141 = arith.addf %139, %140 : vector<8x64xf32>
    %142 = math.tanh %141 : vector<8x64xf32>
    %143 = arith.mulf %137, %142 : vector<8x64xf32>
    %c0_76 = arith.constant 0 : index
    %c0_77 = arith.constant 0 : index
    %144 = vector.load %arg14[%c0_76, %c0_77] : memref<8x64xf32, #tpu.memory_space<vmem>>, vector<8x64xf32>
    tpu.vector_store %arg14[%c0_76, %c0_77], %141 {strides = array<i32>} : memref<8x64xf32, #tpu.memory_space<vmem>>, vector<8x64xf32>,
    %c0_78 = arith.constant 0 : index
    %c0_79 = arith.constant 0 : index
    %145 = vector.load %arg13[%c0_78, %c0_79] : memref<8x64xf32, #tpu.memory_space<vmem>>, vector<8x64xf32>
    tpu.vector_store %arg13[%c0_78, %c0_79], %143 {strides = array<i32>} : memref<8x64xf32, #tpu.memory_space<vmem>>, vector<8x64xf32>,
    %146 = vector.broadcast %c3_i32 : i32 to vector<8x1xi32>
    %147 = arith.cmpi eq, %15, %146 : vector<8x1xi32>
    %c0_80 = arith.constant 0 : index
    %c0_81 = arith.constant 0 : index
    %148 = vector.load %arg15[%c0_80, %c0_81] : memref<8x64xf32, #tpu.memory_space<vmem>>, vector<8x64xf32>
    %149 = vector.shape_cast %147 : vector<8x1xi1> to vector<8x1xi1>
    %150 = vector.broadcast %149 : vector<8x1xi1> to vector<8x64xi1>
    %151 = arith.select %150, %143, %148 : vector<8x64xi1>, vector<8x64xf32>
    %c0_82 = arith.constant 0 : index
    %c0_83 = arith.constant 0 : index
    %152 = vector.load %arg15[%c0_82, %c0_83] : memref<8x64xf32, #tpu.memory_space<vmem>>, vector<8x64xf32>
    tpu.vector_store %arg15[%c0_82, %c0_83], %151 {strides = array<i32>} : memref<8x64xf32, #tpu.memory_space<vmem>>, vector<8x64xf32>,
    %c4_i32 = arith.constant 4 : i32
    %c8_i32_84 = arith.constant 8 : i32
    %153 = arith.muli %c4_i32, %c8_i32_84 : i32
    %154 = tpu.assume_multiple %153, 8 : i32
    %155 = arith.index_cast %154 : i32 to index
    %c0_85 = arith.constant 0 : index
    %156 = vector.load %arg12[%155, %c0_85] : memref<64x256xf32, #tpu.memory_space<vmem>>, vector<8x256xf32>
    %c0_86 = arith.constant 0 : index
    %c0_87 = arith.constant 0 : index
    %157 = vector.load %arg13[%c0_86, %c0_87] : memref<8x64xf32, #tpu.memory_space<vmem>>, vector<8x64xf32>
    %158 = arith.truncf %157 : vector<8x64xf32> to vector<8x64xbf16>
    %cst_88 = arith.constant dense<0.000000e+00> : vector<8x256xf32>
    %159 = tpu.matmul %158, %16, %cst_88 {dimension_numbers = #tpu.dot_dimension_numbers<[1], [0], [0], [1], [0, 0, 1, 1], [], []>} : vector<8x64xbf16>, vector<64x256xbf16>, vector<8x256xf32> -> vector<8x256xf32>
    %160 = arith.addf %156, %159 : vector<8x256xf32>
    %161 = vector.extract_strided_slice %160 {offsets = [0, 0], sizes = [8, 192], strides = [1, 1]} : vector<8x256xf32> to vector<8x192xf32>
    %162 = arith.negf %161 : vector<8x192xf32>
    %163 = math.exp %162 : vector<8x192xf32>
    %cst_89 = arith.constant 1.000000e+00 : f32
    %164 = vector.broadcast %cst_89 : f32 to vector<8x192xf32>
    %165 = arith.addf %164, %163 : vector<8x192xf32>
    %166 = arith.divf %164, %165 : vector<8x192xf32>
    %167 = vector.extract_strided_slice %160 {offsets = [0, 192], sizes = [8, 64], strides = [1, 1]} : vector<8x256xf32> to vector<8x64xf32>
    %168 = math.tanh %167 : vector<8x64xf32>
    %169 = vector.extract_strided_slice %166 {offsets = [0, 0], sizes = [8, 64], strides = [1, 1]} : vector<8x192xf32> to vector<8x64xf32>
    %170 = vector.extract_strided_slice %166 {offsets = [0, 64], sizes = [8, 64], strides = [1, 1]} : vector<8x192xf32> to vector<8x64xf32>
    %171 = vector.extract_strided_slice %166 {offsets = [0, 128], sizes = [8, 64], strides = [1, 1]} : vector<8x192xf32> to vector<8x64xf32>
    %c0_90 = arith.constant 0 : index
    %c0_91 = arith.constant 0 : index
    %172 = vector.load %arg14[%c0_90, %c0_91] : memref<8x64xf32, #tpu.memory_space<vmem>>, vector<8x64xf32>
    %173 = arith.mulf %170, %172 : vector<8x64xf32>
    %174 = arith.mulf %169, %168 : vector<8x64xf32>
    %175 = arith.addf %173, %174 : vector<8x64xf32>
    %176 = math.tanh %175 : vector<8x64xf32>
    %177 = arith.mulf %171, %176 : vector<8x64xf32>
    %c0_92 = arith.constant 0 : index
    %c0_93 = arith.constant 0 : index
    %178 = vector.load %arg14[%c0_92, %c0_93] : memref<8x64xf32, #tpu.memory_space<vmem>>, vector<8x64xf32>
    tpu.vector_store %arg14[%c0_92, %c0_93], %175 {strides = array<i32>} : memref<8x64xf32, #tpu.memory_space<vmem>>, vector<8x64xf32>,
    %c0_94 = arith.constant 0 : index
    %c0_95 = arith.constant 0 : index
    %179 = vector.load %arg13[%c0_94, %c0_95] : memref<8x64xf32, #tpu.memory_space<vmem>>, vector<8x64xf32>
    tpu.vector_store %arg13[%c0_94, %c0_95], %177 {strides = array<i32>} : memref<8x64xf32, #tpu.memory_space<vmem>>, vector<8x64xf32>,
    %180 = vector.broadcast %c4_i32 : i32 to vector<8x1xi32>
    %181 = arith.cmpi eq, %15, %180 : vector<8x1xi32>
    %c0_96 = arith.constant 0 : index
    %c0_97 = arith.constant 0 : index
    %182 = vector.load %arg15[%c0_96, %c0_97] : memref<8x64xf32, #tpu.memory_space<vmem>>, vector<8x64xf32>
    %183 = vector.shape_cast %181 : vector<8x1xi1> to vector<8x1xi1>
    %184 = vector.broadcast %183 : vector<8x1xi1> to vector<8x64xi1>
    %185 = arith.select %184, %177, %182 : vector<8x64xi1>, vector<8x64xf32>
    %c0_98 = arith.constant 0 : index
    %c0_99 = arith.constant 0 : index
    %186 = vector.load %arg15[%c0_98, %c0_99] : memref<8x64xf32, #tpu.memory_space<vmem>>, vector<8x64xf32>
    tpu.vector_store %arg15[%c0_98, %c0_99], %185 {strides = array<i32>} : memref<8x64xf32, #tpu.memory_space<vmem>>, vector<8x64xf32>,
    %c5_i32 = arith.constant 5 : i32
    %c8_i32_100 = arith.constant 8 : i32
    %187 = arith.muli %c5_i32, %c8_i32_100 : i32
    %188 = tpu.assume_multiple %187, 8 : i32
    %189 = arith.index_cast %188 : i32 to index
    %c0_101 = arith.constant 0 : index
    %190 = vector.load %arg12[%189, %c0_101] : memref<64x256xf32, #tpu.memory_space<vmem>>, vector<8x256xf32>
    %c0_102 = arith.constant 0 : index
    %c0_103 = arith.constant 0 : index
    %191 = vector.load %arg13[%c0_102, %c0_103] : memref<8x64xf32, #tpu.memory_space<vmem>>, vector<8x64xf32>
    %192 = arith.truncf %191 : vector<8x64xf32> to vector<8x64xbf16>
    %cst_104 = arith.constant dense<0.000000e+00> : vector<8x256xf32>
    %193 = tpu.matmul %192, %16, %cst_104 {dimension_numbers = #tpu.dot_dimension_numbers<[1], [0], [0], [1], [0, 0, 1, 1], [], []>} : vector<8x64xbf16>, vector<64x256xbf16>, vector<8x256xf32> -> vector<8x256xf32>
    %194 = arith.addf %190, %193 : vector<8x256xf32>
    %195 = vector.extract_strided_slice %194 {offsets = [0, 0], sizes = [8, 192], strides = [1, 1]} : vector<8x256xf32> to vector<8x192xf32>
    %196 = arith.negf %195 : vector<8x192xf32>
    %197 = math.exp %196 : vector<8x192xf32>
    %cst_105 = arith.constant 1.000000e+00 : f32
    %198 = vector.broadcast %cst_105 : f32 to vector<8x192xf32>
    %199 = arith.addf %198, %197 : vector<8x192xf32>
    %200 = arith.divf %198, %199 : vector<8x192xf32>
    %201 = vector.extract_strided_slice %194 {offsets = [0, 192], sizes = [8, 64], strides = [1, 1]} : vector<8x256xf32> to vector<8x64xf32>
    %202 = math.tanh %201 : vector<8x64xf32>
    %203 = vector.extract_strided_slice %200 {offsets = [0, 0], sizes = [8, 64], strides = [1, 1]} : vector<8x192xf32> to vector<8x64xf32>
    %204 = vector.extract_strided_slice %200 {offsets = [0, 64], sizes = [8, 64], strides = [1, 1]} : vector<8x192xf32> to vector<8x64xf32>
    %205 = vector.extract_strided_slice %200 {offsets = [0, 128], sizes = [8, 64], strides = [1, 1]} : vector<8x192xf32> to vector<8x64xf32>
    %c0_106 = arith.constant 0 : index
    %c0_107 = arith.constant 0 : index
    %206 = vector.load %arg14[%c0_106, %c0_107] : memref<8x64xf32, #tpu.memory_space<vmem>>, vector<8x64xf32>
    %207 = arith.mulf %204, %206 : vector<8x64xf32>
    %208 = arith.mulf %203, %202 : vector<8x64xf32>
    %209 = arith.addf %207, %208 : vector<8x64xf32>
    %210 = math.tanh %209 : vector<8x64xf32>
    %211 = arith.mulf %205, %210 : vector<8x64xf32>
    %c0_108 = arith.constant 0 : index
    %c0_109 = arith.constant 0 : index
    %212 = vector.load %arg14[%c0_108, %c0_109] : memref<8x64xf32, #tpu.memory_space<vmem>>, vector<8x64xf32>
    tpu.vector_store %arg14[%c0_108, %c0_109], %209 {strides = array<i32>} : memref<8x64xf32, #tpu.memory_space<vmem>>, vector<8x64xf32>,
    %c0_110 = arith.constant 0 : index
    %c0_111 = arith.constant 0 : index
    %213 = vector.load %arg13[%c0_110, %c0_111] : memref<8x64xf32, #tpu.memory_space<vmem>>, vector<8x64xf32>
    tpu.vector_store %arg13[%c0_110, %c0_111], %211 {strides = array<i32>} : memref<8x64xf32, #tpu.memory_space<vmem>>, vector<8x64xf32>,
    %214 = vector.broadcast %c5_i32 : i32 to vector<8x1xi32>
    %215 = arith.cmpi eq, %15, %214 : vector<8x1xi32>
    %c0_112 = arith.constant 0 : index
    %c0_113 = arith.constant 0 : index
    %216 = vector.load %arg15[%c0_112, %c0_113] : memref<8x64xf32, #tpu.memory_space<vmem>>, vector<8x64xf32>
    %217 = vector.shape_cast %215 : vector<8x1xi1> to vector<8x1xi1>
    %218 = vector.broadcast %217 : vector<8x1xi1> to vector<8x64xi1>
    %219 = arith.select %218, %211, %216 : vector<8x64xi1>, vector<8x64xf32>
    %c0_114 = arith.constant 0 : index
    %c0_115 = arith.constant 0 : index
    %220 = vector.load %arg15[%c0_114, %c0_115] : memref<8x64xf32, #tpu.memory_space<vmem>>, vector<8x64xf32>
    tpu.vector_store %arg15[%c0_114, %c0_115], %219 {strides = array<i32>} : memref<8x64xf32, #tpu.memory_space<vmem>>, vector<8x64xf32>,
    %c6_i32 = arith.constant 6 : i32
    %c8_i32_116 = arith.constant 8 : i32
    %221 = arith.muli %c6_i32, %c8_i32_116 : i32
    %222 = tpu.assume_multiple %221, 8 : i32
    %223 = arith.index_cast %222 : i32 to index
    %c0_117 = arith.constant 0 : index
    %224 = vector.load %arg12[%223, %c0_117] : memref<64x256xf32, #tpu.memory_space<vmem>>, vector<8x256xf32>
    %c0_118 = arith.constant 0 : index
    %c0_119 = arith.constant 0 : index
    %225 = vector.load %arg13[%c0_118, %c0_119] : memref<8x64xf32, #tpu.memory_space<vmem>>, vector<8x64xf32>
    %226 = arith.truncf %225 : vector<8x64xf32> to vector<8x64xbf16>
    %cst_120 = arith.constant dense<0.000000e+00> : vector<8x256xf32>
    %227 = tpu.matmul %226, %16, %cst_120 {dimension_numbers = #tpu.dot_dimension_numbers<[1], [0], [0], [1], [0, 0, 1, 1], [], []>} : vector<8x64xbf16>, vector<64x256xbf16>, vector<8x256xf32> -> vector<8x256xf32>
    %228 = arith.addf %224, %227 : vector<8x256xf32>
    %229 = vector.extract_strided_slice %228 {offsets = [0, 0], sizes = [8, 192], strides = [1, 1]} : vector<8x256xf32> to vector<8x192xf32>
    %230 = arith.negf %229 : vector<8x192xf32>
    %231 = math.exp %230 : vector<8x192xf32>
    %cst_121 = arith.constant 1.000000e+00 : f32
    %232 = vector.broadcast %cst_121 : f32 to vector<8x192xf32>
    %233 = arith.addf %232, %231 : vector<8x192xf32>
    %234 = arith.divf %232, %233 : vector<8x192xf32>
    %235 = vector.extract_strided_slice %228 {offsets = [0, 192], sizes = [8, 64], strides = [1, 1]} : vector<8x256xf32> to vector<8x64xf32>
    %236 = math.tanh %235 : vector<8x64xf32>
    %237 = vector.extract_strided_slice %234 {offsets = [0, 0], sizes = [8, 64], strides = [1, 1]} : vector<8x192xf32> to vector<8x64xf32>
    %238 = vector.extract_strided_slice %234 {offsets = [0, 64], sizes = [8, 64], strides = [1, 1]} : vector<8x192xf32> to vector<8x64xf32>
    %239 = vector.extract_strided_slice %234 {offsets = [0, 128], sizes = [8, 64], strides = [1, 1]} : vector<8x192xf32> to vector<8x64xf32>
    %c0_122 = arith.constant 0 : index
    %c0_123 = arith.constant 0 : index
    %240 = vector.load %arg14[%c0_122, %c0_123] : memref<8x64xf32, #tpu.memory_space<vmem>>, vector<8x64xf32>
    %241 = arith.mulf %238, %240 : vector<8x64xf32>
    %242 = arith.mulf %237, %236 : vector<8x64xf32>
    %243 = arith.addf %241, %242 : vector<8x64xf32>
    %244 = math.tanh %243 : vector<8x64xf32>
    %245 = arith.mulf %239, %244 : vector<8x64xf32>
    %c0_124 = arith.constant 0 : index
    %c0_125 = arith.constant 0 : index
    %246 = vector.load %arg14[%c0_124, %c0_125] : memref<8x64xf32, #tpu.memory_space<vmem>>, vector<8x64xf32>
    tpu.vector_store %arg14[%c0_124, %c0_125], %243 {strides = array<i32>} : memref<8x64xf32, #tpu.memory_space<vmem>>, vector<8x64xf32>,
    %c0_126 = arith.constant 0 : index
    %c0_127 = arith.constant 0 : index
    %247 = vector.load %arg13[%c0_126, %c0_127] : memref<8x64xf32, #tpu.memory_space<vmem>>, vector<8x64xf32>
    tpu.vector_store %arg13[%c0_126, %c0_127], %245 {strides = array<i32>} : memref<8x64xf32, #tpu.memory_space<vmem>>, vector<8x64xf32>,
    %248 = vector.broadcast %c6_i32 : i32 to vector<8x1xi32>
    %249 = arith.cmpi eq, %15, %248 : vector<8x1xi32>
    %c0_128 = arith.constant 0 : index
    %c0_129 = arith.constant 0 : index
    %250 = vector.load %arg15[%c0_128, %c0_129] : memref<8x64xf32, #tpu.memory_space<vmem>>, vector<8x64xf32>
    %251 = vector.shape_cast %249 : vector<8x1xi1> to vector<8x1xi1>
    %252 = vector.broadcast %251 : vector<8x1xi1> to vector<8x64xi1>
    %253 = arith.select %252, %245, %250 : vector<8x64xi1>, vector<8x64xf32>
    %c0_130 = arith.constant 0 : index
    %c0_131 = arith.constant 0 : index
    %254 = vector.load %arg15[%c0_130, %c0_131] : memref<8x64xf32, #tpu.memory_space<vmem>>, vector<8x64xf32>
    tpu.vector_store %arg15[%c0_130, %c0_131], %253 {strides = array<i32>} : memref<8x64xf32, #tpu.memory_space<vmem>>, vector<8x64xf32>,
    %c7_i32 = arith.constant 7 : i32
    %c8_i32_132 = arith.constant 8 : i32
    %255 = arith.muli %c7_i32, %c8_i32_132 : i32
    %256 = tpu.assume_multiple %255, 8 : i32
    %257 = arith.index_cast %256 : i32 to index
    %c0_133 = arith.constant 0 : index
    %258 = vector.load %arg12[%257, %c0_133] : memref<64x256xf32, #tpu.memory_space<vmem>>, vector<8x256xf32>
    %c0_134 = arith.constant 0 : index
    %c0_135 = arith.constant 0 : index
    %259 = vector.load %arg13[%c0_134, %c0_135] : memref<8x64xf32, #tpu.memory_space<vmem>>, vector<8x64xf32>
    %260 = arith.truncf %259 : vector<8x64xf32> to vector<8x64xbf16>
    %cst_136 = arith.constant dense<0.000000e+00> : vector<8x256xf32>
    %261 = tpu.matmul %260, %16, %cst_136 {dimension_numbers = #tpu.dot_dimension_numbers<[1], [0], [0], [1], [0, 0, 1, 1], [], []>} : vector<8x64xbf16>, vector<64x256xbf16>, vector<8x256xf32> -> vector<8x256xf32>
    %262 = arith.addf %258, %261 : vector<8x256xf32>
    %263 = vector.extract_strided_slice %262 {offsets = [0, 0], sizes = [8, 192], strides = [1, 1]} : vector<8x256xf32> to vector<8x192xf32>
    %264 = arith.negf %263 : vector<8x192xf32>
    %265 = math.exp %264 : vector<8x192xf32>
    %cst_137 = arith.constant 1.000000e+00 : f32
    %266 = vector.broadcast %cst_137 : f32 to vector<8x192xf32>
    %267 = arith.addf %266, %265 : vector<8x192xf32>
    %268 = arith.divf %266, %267 : vector<8x192xf32>
    %269 = vector.extract_strided_slice %262 {offsets = [0, 192], sizes = [8, 64], strides = [1, 1]} : vector<8x256xf32> to vector<8x64xf32>
    %270 = math.tanh %269 : vector<8x64xf32>
    %271 = vector.extract_strided_slice %268 {offsets = [0, 0], sizes = [8, 64], strides = [1, 1]} : vector<8x192xf32> to vector<8x64xf32>
    %272 = vector.extract_strided_slice %268 {offsets = [0, 64], sizes = [8, 64], strides = [1, 1]} : vector<8x192xf32> to vector<8x64xf32>
    %273 = vector.extract_strided_slice %268 {offsets = [0, 128], sizes = [8, 64], strides = [1, 1]} : vector<8x192xf32> to vector<8x64xf32>
    %c0_138 = arith.constant 0 : index
    %c0_139 = arith.constant 0 : index
    %274 = vector.load %arg14[%c0_138, %c0_139] : memref<8x64xf32, #tpu.memory_space<vmem>>, vector<8x64xf32>
    %275 = arith.mulf %272, %274 : vector<8x64xf32>
    %276 = arith.mulf %271, %270 : vector<8x64xf32>
    %277 = arith.addf %275, %276 : vector<8x64xf32>
    %278 = math.tanh %277 : vector<8x64xf32>
    %279 = arith.mulf %273, %278 : vector<8x64xf32>
    %c0_140 = arith.constant 0 : index
    %c0_141 = arith.constant 0 : index
    %280 = vector.load %arg14[%c0_140, %c0_141] : memref<8x64xf32, #tpu.memory_space<vmem>>, vector<8x64xf32>
    tpu.vector_store %arg14[%c0_140, %c0_141], %277 {strides = array<i32>} : memref<8x64xf32, #tpu.memory_space<vmem>>, vector<8x64xf32>,
    %c0_142 = arith.constant 0 : index
    %c0_143 = arith.constant 0 : index
    %281 = vector.load %arg13[%c0_142, %c0_143] : memref<8x64xf32, #tpu.memory_space<vmem>>, vector<8x64xf32>
    tpu.vector_store %arg13[%c0_142, %c0_143], %279 {strides = array<i32>} : memref<8x64xf32, #tpu.memory_space<vmem>>, vector<8x64xf32>,
    %282 = vector.broadcast %c7_i32 : i32 to vector<8x1xi32>
    %283 = arith.cmpi eq, %15, %282 : vector<8x1xi32>
    %c0_144 = arith.constant 0 : index
    %c0_145 = arith.constant 0 : index
    %284 = vector.load %arg15[%c0_144, %c0_145] : memref<8x64xf32, #tpu.memory_space<vmem>>, vector<8x64xf32>
    %285 = vector.shape_cast %283 : vector<8x1xi1> to vector<8x1xi1>
    %286 = vector.broadcast %285 : vector<8x1xi1> to vector<8x64xi1>
    %287 = arith.select %286, %279, %284 : vector<8x64xi1>, vector<8x64xf32>
    %c0_146 = arith.constant 0 : index
    %c0_147 = arith.constant 0 : index
    %288 = vector.load %arg15[%c0_146, %c0_147] : memref<8x64xf32, #tpu.memory_space<vmem>>, vector<8x64xf32>
    tpu.vector_store %arg15[%c0_146, %c0_147], %287 {strides = array<i32>} : memref<8x64xf32, #tpu.memory_space<vmem>>, vector<8x64xf32>,
    %c8_i32_148 = arith.constant 8 : i32
    %c0_149 = arith.constant 0 : index
    %c0_150 = arith.constant 0 : index
    %289 = vector.load %arg15[%c0_149, %c0_150] : memref<8x64xf32, #tpu.memory_space<vmem>>, vector<8x64xf32>
    %290 = arith.truncf %289 : vector<8x64xf32> to vector<8x64xbf16>
    %c0_151 = arith.constant 0 : index
    %c0_152 = arith.constant 0 : index
    %291 = vector.load %arg5[%c0_151, %c0_152] : memref<64x64xbf16, #tpu.memory_space<vmem>>, vector<64x64xbf16>
    %cst_153 = arith.constant dense<0.000000e+00> : vector<8x64xf32>
    %292 = tpu.matmul %290, %291, %cst_153 {dimension_numbers = #tpu.dot_dimension_numbers<[1], [0], [0], [1], [0, 0, 1, 1], [], []>} : vector<8x64xbf16>, vector<64x64xbf16>, vector<8x64xf32> -> vector<8x64xf32>
    %c0_154 = arith.constant 0 : index
    %c0_155 = arith.constant 0 : index
    %293 = vector.load %arg6[%c0_154, %c0_155] : memref<1x64xf32, #tpu.memory_space<vmem>>, vector<1x64xf32>
    %294 = vector.broadcast %293 : vector<1x64xf32> to vector<8x64xf32>
    %295 = arith.addf %292, %294 : vector<8x64xf32>
    %cst_156 = arith.constant 0.000000e+00 : f32
    %296 = vector.broadcast %cst_156 : f32 to vector<8x64xf32>
    %297 = arith.maximumf %295, %296 : vector<8x64xf32>
    %298 = arith.truncf %297 : vector<8x64xf32> to vector<8x64xbf16>
    %c0_157 = arith.constant 0 : index
    %c0_158 = arith.constant 0 : index
    %299 = vector.load %arg7[%c0_157, %c0_158] : memref<64x64xbf16, #tpu.memory_space<vmem>>, vector<64x64xbf16>
    %cst_159 = arith.constant dense<0.000000e+00> : vector<8x64xf32>
    %300 = tpu.matmul %298, %299, %cst_159 {dimension_numbers = #tpu.dot_dimension_numbers<[1], [0], [0], [1], [0, 0, 1, 1], [], []>} : vector<8x64xbf16>, vector<64x64xbf16>, vector<8x64xf32> -> vector<8x64xf32>
    %c0_160 = arith.constant 0 : index
    %c0_161 = arith.constant 0 : index
    %301 = vector.load %arg8[%c0_160, %c0_161] : memref<1x64xf32, #tpu.memory_space<vmem>>, vector<1x64xf32>
    %302 = vector.broadcast %301 : vector<1x64xf32> to vector<8x64xf32>
    %303 = arith.addf %300, %302 : vector<8x64xf32>
    %cst_162 = arith.constant 0.000000e+00 : f32
    %304 = vector.broadcast %cst_162 : f32 to vector<8x64xf32>
    %305 = arith.maximumf %303, %304 : vector<8x64xf32>
    %306 = arith.truncf %305 : vector<8x64xf32> to vector<8x64xbf16>
    %c0_163 = arith.constant 0 : index
    %c0_164 = arith.constant 0 : index
    %307 = vector.load %arg9[%c0_163, %c0_164] : memref<64x1xbf16, #tpu.memory_space<vmem>>, vector<64x1xbf16>
    %cst_165 = arith.constant dense<0.000000e+00> : vector<8x1xf32>
    %308 = tpu.matmul %306, %307, %cst_165 {dimension_numbers = #tpu.dot_dimension_numbers<[1], [0], [0], [1], [0, 0, 1, 1], [], []>} : vector<8x64xbf16>, vector<64x1xbf16>, vector<8x1xf32> -> vector<8x1xf32>
    %c0_166 = arith.constant 0 : index
    %c0_167 = arith.constant 0 : index
    %309 = vector.load %arg10[%c0_166, %c0_167] : memref<1x1xf32, #tpu.memory_space<vmem>>, vector<1x1xf32>
    %310 = vector.broadcast %309 : vector<1x1xf32> to vector<8x1xf32>
    %311 = arith.addf %308, %310 : vector<8x1xf32>
    %312 = arith.negf %311 : vector<8x1xf32>
    %313 = math.exp %312 : vector<8x1xf32>
    %cst_168 = arith.constant 1.000000e+00 : f32
    %314 = vector.broadcast %cst_168 : f32 to vector<8x1xf32>
    %315 = arith.addf %314, %313 : vector<8x1xf32>
    %316 = arith.divf %314, %315 : vector<8x1xf32>
    %c0_169 = arith.constant 0 : index
    %c0_170 = arith.constant 0 : index
    %317 = vector.load %arg11[%c0_169, %c0_170] : memref<8x1xf32, #tpu.memory_space<vmem>>, vector<8x1xf32>
    tpu.vector_store %arg11[%c0_169, %c0_170], %316 {strides = array<i32>} : memref<8x1xf32, #tpu.memory_space<vmem>>, vector<8x1xf32>,
    return
  }
}

</mosaic_0001>

<llo_original>
// kernel: tpu_custom_call.1
$region0: #{tpu_custom_call.1}
  #allocation0 [shape = 'u32[]', space=smem, size = 0x4, offset = 0x4, fixed_abs, tag = 'smem constant byte address 0x4 - core index']
  #allocation1 [shape = 'u32[144,128]{1,0:T(1,128)}', space=vmem, size = 0x12000, scoped, tag = 'internal scratch']
  #allocation2 [shape = 'f32[64,256]{1,0:T(8,128)}', space=vmem, size = 0x10000, scoped, tag = 'scratch operand']
  #allocation3 [shape = 'f32[8,64]{1,0:T(8,128)}', space=vmem, size = 0x1000, scoped, tag = 'scratch operand']
  #allocation4 [shape = 'f32[8,64]{1,0:T(8,128)}', space=vmem, size = 0x1000, scoped, tag = 'scratch operand']
  #allocation5 [shape = 'f32[8,64]{1,0:T(8,128)}', space=vmem, size = 0x1000, scoped, tag = 'scratch operand']
  #allocation6 [shape = 'f32[1,1]{1,0:T(1,128)S(1)}', space=vmem, size = 0x200, scoped, tag = 'scoped memory for tpu_custom_call.1']
  %s0 = inlined_call_operand.vmem [shape: s32[8,1], index: 0, kind: input, shape index: {}]
  %s1 = inlined_call_operand.vmem [shape: bf16[64,20], index: 1, kind: input, shape index: {}]
  %s2 = inlined_call_operand.hbm [shape: bf16[20,256], index: 2, kind: input, shape index: {}]
  %s3 = inlined_call_operand.vmem [shape: bf16[64,256], index: 3, kind: input, shape index: {}]
  %s4 = inlined_call_operand.vmem [shape: f32[1,256], index: 4, kind: input, shape index: {}]
  %s5 = inlined_call_operand.vmem [shape: bf16[64,64], index: 5, kind: input, shape index: {}]
  %s6 = inlined_call_operand.vmem [shape: f32[1,64], index: 6, kind: input, shape index: {}]
  %s7 = inlined_call_operand.hbm [shape: bf16[64,64], index: 7, kind: input, shape index: {}]
  %s8 = inlined_call_operand.vmem [shape: f32[1,64], index: 8, kind: input, shape index: {}]
  %s9 = inlined_call_operand.vmem [shape: bf16[64,1], index: 9, kind: input, shape index: {}]
  %s10 = inlined_call_operand.<no memory space> [shape: f32[1,1], index: 10, kind: input, shape index: {}]
  %s11 = inlined_call_operand.vmem [shape: f32[8,1], index: 11, kind: output, shape index: {}]
  %s12 = sld [smem:[#allocation0]]
  $region62: #{tpu_custom_call.1} parent=0
    _
  %s14 = ssub.s32 1, %s12
  %s15 = scalar_select 0, %s14, %s12
  %v16 = vstv %s10
  %17 = vst [vmem:[#allocation6] sm:$0x1] %v16
  $region1: #{tpu_custom_call.1} parent=0
    #allocation7 [shape = 'u8[12288]{0}', space=vmem, size = 0x3000, scoped, tag = 'input window, operand 2, single buffered']
    #allocation8 [shape = 's32[1]{0}', space=sflag, size = 0x4, scoped, tag = 'scoped memory for tpu_custom_call.1']
    #allocation9 [shape = 'u8[16384]{0}', space=vmem, size = 0x4000, scoped, tag = 'input window, operand 7, single buffered']
    #allocation10 [shape = 's32[1]{0}', space=sflag, size = 0x4, scoped, tag = 'scoped memory for tpu_custom_call.1']
    %18 = vsyncpa [#allocation8], 0
    %19 = vsyncpa [#allocation10], 0
    // Predicated region
    $region2: #{tpu_custom_call.1} parent=1 // pred_check
      _
    $region3: #{tpu_custom_call.1} parent=1 // pred_check_branch
      %21 = sbr.rel (0) target = $region5
    $region4: #{tpu_custom_call.1} parent=1 // pred_region
      _
    $region5: #{tpu_custom_call.1} parent=1 // pred_fallthru
      _
    // Predicated region
    $region6: #{tpu_custom_call.1} parent=1 // pred_check
      _
    $region7: #{tpu_custom_call.1} parent=1 // pred_check_branch
      %23 = sbr.rel (0) target = $region9
    $region8: #{tpu_custom_call.1} parent=1 // pred_region
      _
    $region9: #{tpu_custom_call.1} parent=1 // pred_fallthru
      _
    // Predicated region
    $region10: #{tpu_custom_call.1} parent=1 // pred_check
      _
    $region11: #{tpu_custom_call.1} parent=1 // pred_check_branch
      %25 = sbr.rel (0) target = $region13
    $region12: #{tpu_custom_call.1} parent=1 // pred_region
      %s27 = ssub.s32 384, 384
      %28 = vsyncadd [#allocation8], %s27
      %s29 = sshll.u32 [#allocation7], 4
      %s30 = int_to_ptr.vmem [resolvable:$true] %s29
      %35 = dma.hbm_to_vmem [thread:$0]  %s2, 384, %s30, [#allocation8], 128, 128, 8
    $region13: #{tpu_custom_call.1} parent=1 // pred_fallthru
      _
    // Predicated region
    $region14: #{tpu_custom_call.1} parent=1 // pred_check
      _
    $region15: #{tpu_custom_call.1} parent=1 // pred_check_branch
      %37 = sbr.rel (0) target = $region17
    $region16: #{tpu_custom_call.1} parent=1 // pred_region
      _
    $region17: #{tpu_custom_call.1} parent=1 // pred_fallthru
      _
    // Predicated region
    $region18: #{tpu_custom_call.1} parent=1 // pred_check
      _
    $region19: #{tpu_custom_call.1} parent=1 // pred_check_branch
      %39 = sbr.rel (0) target = $region21
    $region20: #{tpu_custom_call.1} parent=1 // pred_region
      _
    $region21: #{tpu_custom_call.1} parent=1 // pred_fallthru
      _
    // Predicated region
    $region22: #{tpu_custom_call.1} parent=1 // pred_check
      _
    $region23: #{tpu_custom_call.1} parent=1 // pred_check_branch
      %41 = sbr.rel (0) target = $region25
    $region24: #{tpu_custom_call.1} parent=1 // pred_region
      _
    $region25: #{tpu_custom_call.1} parent=1 // pred_fallthru
      _
    // Predicated region
    $region26: #{tpu_custom_call.1} parent=1 // pred_check
      _
    $region27: #{tpu_custom_call.1} parent=1 // pred_check_branch
      %43 = sbr.rel (0) target = $region29
    $region28: #{tpu_custom_call.1} parent=1 // pred_region
      _
    $region29: #{tpu_custom_call.1} parent=1 // pred_fallthru
      _
    // Predicated region
    $region30: #{tpu_custom_call.1} parent=1 // pred_check
      _
    $region31: #{tpu_custom_call.1} parent=1 // pred_check_branch
      %45 = sbr.rel (0) target = $region33
    $region32: #{tpu_custom_call.1} parent=1 // pred_region
      %s47 = ssub.s32 512, 512
      %48 = vsyncadd [#allocation10], %s47
      %s49 = sshll.u32 [#allocation9], 4
      %s50 = int_to_ptr.vmem [resolvable:$true] %s49
      %55 = dma.hbm_to_vmem [thread:$0]  %s7, 512, %s50, [#allocation10], 64, 64, 4
    $region33: #{tpu_custom_call.1} parent=1 // pred_fallthru
      _
    // Predicated region
    $region34: #{tpu_custom_call.1} parent=1 // pred_check
      _
    $region35: #{tpu_custom_call.1} parent=1 // pred_check_branch
      %57 = sbr.rel (0) target = $region37
    $region36: #{tpu_custom_call.1} parent=1 // pred_region
      _
    $region37: #{tpu_custom_call.1} parent=1 // pred_fallthru
      _
    // Predicated region
    $region38: #{tpu_custom_call.1} parent=1 // pred_check
      _
    $region39: #{tpu_custom_call.1} parent=1 // pred_check_branch
      %59 = sbr.rel (0) target = $region41
    $region40: #{tpu_custom_call.1} parent=1 // pred_region
      _
    $region41: #{tpu_custom_call.1} parent=1 // pred_fallthru
      _
    // Predicated region
    $region42: #{tpu_custom_call.1} parent=1 // pred_check
      _
    $region43: #{tpu_custom_call.1} parent=1 // pred_check_branch
      %61 = sbr.rel (0) target = $region45
    $region44: #{tpu_custom_call.1} parent=1 // pred_region
      _
    $region45: #{tpu_custom_call.1} parent=1 // pred_fallthru
      _
    // Predicated region
    $region46: #{tpu_custom_call.1} parent=1 // pred_check
      _
    $region47: #{tpu_custom_call.1} parent=1 // pred_check_branch
      %63 = sbr.rel (0) target = $region49
    $region48: #{tpu_custom_call.1} parent=1 // pred_region
      %64 = dma.done [#allocation8], 384
    $region49: #{tpu_custom_call.1} parent=1 // pred_fallthru
      _
    // Predicated region
    $region50: #{tpu_custom_call.1} parent=1 // pred_check
      _
    $region51: #{tpu_custom_call.1} parent=1 // pred_check_branch
      %66 = sbr.rel (0) target = $region53
    $region52: #{tpu_custom_call.1} parent=1 // pred_region
      %67 = dma.done [#allocation10], 512
    $region53: #{tpu_custom_call.1} parent=1 // pred_fallthru
      _
    %v69 = vld [vmem:[%s1] sm:$0xf]
    %v70 = vld [vmem:[%s1 + $0x4] sm:$0xf]
    %v71 = vld [vmem:[%s1 + $0x8] sm:$0xf]
    %v72 = vld [vmem:[%s1 + $0xc] sm:$0xf]
    %v73 = vld [vmem:[%s1 + $0x10] sm:$0xf]
    %v74 = vld [vmem:[%s1 + $0x14] sm:$0xf]
    %v75 = vld [vmem:[%s1 + $0x18] sm:$0xf]
    %v76 = vld [vmem:[%s1 + $0x1c] sm:$0xf]
    %v77 = vld [vmem:[#allocation7] sm:$0xff]
    %v78 = vld [vmem:[#allocation7 + $0x8] sm:$0xff]
    %v79 = vld [vmem:[#allocation7 + $0x10] sm:$0x33]
    %v80 = vld [vmem:[%s4] sm:$0x3]
    %v82 = vlaneseq
    %v83 = vshrl.u32 %v82, 7
    %v84 = vsub.s32 0, %v83
    %v85 = vrot.slane %v80, %v84
    %v86 = vlaneseq
    %v87 = vshrl.u32 %v86, 7
    %v88 = vsub.s32 1, %v87
    %v89 = vrot.slane %v80, %v88
    %v100 = vunpack.c.l.b16 %v69
    %v101 = vunpack.c.l.b16 %v70
    %v102 = vunpack.c.l.b16 %v71
    %v103 = vunpack.c.l.b16 %v72
    %v104 = vunpack.c.l.b16 %v73
    %v105 = vunpack.c.l.b16 %v74
    %v106 = vunpack.c.l.b16 %v75
    %v107 = vunpack.c.l.b16 %v76
    %v108 = vpack.c.b16 %v101, %v100
    %v109 = vpack.c.b16 %v103, %v102
    %v110 = vpack.c.b16 %v105, %v104
    %v111 = vpack.c.b16 %v107, %v106
    %v115 = vunpack.c.l.b16 %v77
    %v116 = vunpack.c.h.b16 %v77
    %v117 = vunpack.c.l.b16 %v78
    %v118 = vunpack.c.h.b16 %v78
    %v119 = vunpack.c.l.b16 %v79
    %v120 = vunpack.c.h.b16 %v79
    %v121 = vpack.c.b16 %v117, %v115
    %v122 = vpack.c.b16 %v118, %v116
    %v123 = vpack.c.b16 %v119, %v119
    %v124 = vpack.c.b16 %v120, %v120
    %vm127 = vcmask 162816
    %v129 = vsel %vm127, %v108, 0
    %v132 = vsel %vm127, %v109, 0
    %v135 = vsel %vm127, %v110, 0
    %v138 = vsel %vm127, %v111, 0
    %vm140 = vcmask 1041408
    %v142 = vsel %vm140, %v123, 0
    %v145 = vsel %vm140, %v124, 0
    %147 = vmatprep.subr.bf16.mxu0 %v122
    %148 = vmatpush1.bf16.msra.mxu0 %v121
    %149 = vmatprep.subr.bf16.mxu0 %v145
    %150 = vmatpush1.bf16.msra.mxu0 %v142
    %151 = vmatprep.subr.bf16.mxu0 0
    %152 = vmatpush1.bf16.msra.mxu0 0
    %153 = vmatprep.subr.bf16.mxu0 0
    %154 = vmatpush1.bf16.msra.mxu0 0
    %155 = vmatprep.subr.bf16.mxu0 0
    %156 = vmatpush1.bf16.msra.mxu0 0
    %157 = vmatprep.subr.bf16.mxu0 0
    %158 = vmatpush1.bf16.msra.mxu0 0
    %159 = vmatprep.subr.bf16.mxu0 0
    %160 = vmatpush1.bf16.msra.mxu0 0
    %161 = vmatprep.subr.bf16.mxu0 0
    %162 = vmatpush1.bf16.msra.mxu0 0
    %163 = vmatprep.subr.bf16.mxu0 0
    %164 = vmatpush1.bf16.msra.mxu0 0
    %165 = vmatprep.subr.bf16.mxu0 0
    %166 = vmatpush1.bf16.msra.mxu0 0
    %167 = vmatprep.subr.bf16.mxu0 0
    %168 = vmatpush1.bf16.msra.mxu0 0
    %169 = vmatprep.subr.bf16.mxu0 0
    %170 = vmatpush1.bf16.msra.mxu0 0
    %171 = vmatprep.subr.bf16.mxu0 0
    %172 = vmatpush1.bf16.msra.mxu0 0
    %173 = vmatprep.subr.bf16.mxu0 0
    %174 = vmatpush1.bf16.msra.mxu0 0
    %175 = vmatprep.subr.bf16.mxu0 0
    %176 = vmatpush1.bf16.msra.mxu0 0
    %177 = vmatprep.subr.bf16.mxu0 0
    %178 = vmatpush1.bf16.msra.mxu0 0
    %179 = vmatprep.mubr.bf16.mxu0 0
    %180 = vmatmul.mubr.bf16.gmra.mrb[0].mxu0 %v129
    %v181 = vpop.f32.mrb[0].mxu0
    %v182 = vadd.f32 %v85, %v181
    %v183 = vpop.f32.mrb[0].mxu0
    %v184 = vadd.f32 %v89, %v183
    %v185 = vpop.f32.mrb[0].mxu0
    %v186 = vadd.f32 %v85, %v185
    %v187 = vpop.f32.mrb[0].mxu0
    %v188 = vadd.f32 %v89, %v187
    %189 = vmatprep.mubr.bf16.mxu0 0
    %190 = vmatmul.mubr.bf16.gmra.mrb[0].mxu0 %v132
    %v191 = vpop.f32.mrb[0].mxu0
    %v192 = vadd.f32 %v85, %v191
    %v193 = vpop.f32.mrb[0].mxu0
    %v194 = vadd.f32 %v89, %v193
    %v195 = vpop.f32.mrb[0].mxu0
    %v196 = vadd.f32 %v85, %v195
    %v197 = vpop.f32.mrb[0].mxu0
    %v198 = vadd.f32 %v89, %v197
    %199 = vmatprep.mubr.bf16.mxu0 0
    %200 = vmatmul.mubr.bf16.gmra.mrb[0].mxu0 %v135
    %v201 = vpop.f32.mrb[0].mxu0
    %v202 = vadd.f32 %v85, %v201
    %v203 = vpop.f32.mrb[0].mxu0
    %v204 = vadd.f32 %v89, %v203
    %v205 = vpop.f32.mrb[0].mxu0
    %v206 = vadd.f32 %v85, %v205
    %v207 = vpop.f32.mrb[0].mxu0
    %v208 = vadd.f32 %v89, %v207
    %209 = vmatprep.mubr.bf16.mxu0 0
    %210 = vmatmul.mubr.bf16.gmra.mrb[0].mxu0 %v138
    %v211 = vpop.f32.mrb[0].mxu0
    %v212 = vadd.f32 %v85, %v211
    %v213 = vpop.f32.mrb[0].mxu0
    %v214 = vadd.f32 %v89, %v213
    %v215 = vpop.f32.mrb[0].mxu0
    %v216 = vadd.f32 %v85, %v215
    %v217 = vpop.f32.mrb[0].mxu0
    %v218 = vadd.f32 %v89, %v217
    %219 = vdwg.mxu0
    %220 = vst [vmem:[#allocation2] sm:$0xff] %v182
    %221 = vst [vmem:[#allocation2 + $0x8] sm:$0xff] %v184
    %222 = vst [vmem:[#allocation2 + $0x10] sm:$0xff] %v186
    %223 = vst [vmem:[#allocation2 + $0x18] sm:$0xff] %v188
    %224 = vst [vmem:[#allocation2 + $0x20] sm:$0xff] %v192
    %225 = vst [vmem:[#allocation2 + $0x28] sm:$0xff] %v194
    %226 = vst [vmem:[#allocation2 + $0x30] sm:$0xff] %v196
    %227 = vst [vmem:[#allocation2 + $0x38] sm:$0xff] %v198
    %228 = vst [vmem:[#allocation2 + $0x40] sm:$0xff] %v202
    %229 = vst [vmem:[#allocation2 + $0x48] sm:$0xff] %v204
    %230 = vst [vmem:[#allocation2 + $0x50] sm:$0xff] %v206
    %231 = vst [vmem:[#allocation2 + $0x58] sm:$0xff] %v208
    %232 = vst [vmem:[#allocation2 + $0x60] sm:$0xff] %v212
    %233 = vst [vmem:[#allocation2 + $0x68] sm:$0xff] %v214
    %234 = vst [vmem:[#allocation2 + $0x70] sm:$0xff] %v216
    %235 = vst [vmem:[#allocation2 + $0x78] sm:$0xff] %v218
    %vm236 = vcmask 523264
    %237 = vst.msk [vmem:[#allocation3] sm:$0xff] %vm236, 0.0
    %238 = vst.msk [vmem:[#allocation4] sm:$0xff] %vm236, 0.0
    %239 = vst.msk [vmem:[#allocation5] sm:$0xff] %vm236, 0.0
    %v240 = vld [vmem:[%s0] sm:$0xff]
    %v241 = vsub.s32 %v240, 1
    %v242 = vld [vmem:[%s3] sm:$0xff]
    %v243 = vld [vmem:[%s3 + $0x8] sm:$0xff]
    %v244 = vld [vmem:[%s3 + $0x10] sm:$0xff]
    %v245 = vld [vmem:[%s3 + $0x18] sm:$0xff]
    %v246 = vld [vmem:[%s3 + $0x20] sm:$0xff]
    %v247 = vld [vmem:[%s3 + $0x28] sm:$0xff]
    %v248 = vld [vmem:[%s3 + $0x30] sm:$0xff]
    %v249 = vld [vmem:[%s3 + $0x38] sm:$0xff]
    %s250 = smul.u32 0, 2
    %s251 = smul.addr %s250, 8
    %s252 = scalar_lea.vmem [#allocation2], %s251
    %v253 = vld [vmem:[%s252] sm:$0xff]
    %v254 = vld [vmem:[%s252 + $0x8] sm:$0xff]
    %v255 = vld [vmem:[#allocation3] sm:$0xff]
    %v256 = vpack.c.bf16 %v255, %v255
    %v265 = vunpack.c.l.b16 %v242
    %v266 = vunpack.c.h.b16 %v242
    %v267 = vunpack.c.l.b16 %v243
    %v268 = vunpack.c.h.b16 %v243
    %v269 = vunpack.c.l.b16 %v244
    %v270 = vunpack.c.h.b16 %v244
    %v271 = vunpack.c.l.b16 %v245
    %v272 = vunpack.c.h.b16 %v245
    %v273 = vunpack.c.l.b16 %v246
    %v274 = vunpack.c.h.b16 %v246
    %v275 = vunpack.c.l.b16 %v247
    %v276 = vunpack.c.h.b16 %v247
    %v277 = vunpack.c.l.b16 %v248
    %v278 = vunpack.c.h.b16 %v248
    %v279 = vunpack.c.l.b16 %v249
    %v280 = vunpack.c.h.b16 %v249
    %v281 = vpack.c.b16 %v267, %v265
    %v282 = vpack.c.b16 %v268, %v266
    %v283 = vpack.c.b16 %v271, %v269
    %v284 = vpack.c.b16 %v272, %v270
    %v285 = vpack.c.b16 %v275, %v273
    %v286 = vpack.c.b16 %v276, %v274
    %v287 = vpack.c.b16 %v279, %v277
    %v288 = vpack.c.b16 %v280, %v278
    %v298 = vsel %vm236, %v256, 0
    %300 = vmatprep.subr.bf16.mxu0 %v282
    %301 = vmatpush1.bf16.msra.mxu0 %v281
    %302 = vmatprep.subr.bf16.mxu0 %v284
    %303 = vmatpush1.bf16.msra.mxu0 %v283
    %304 = vmatprep.subr.bf16.mxu0 %v286
    %305 = vmatpush1.bf16.msra.mxu0 %v285
    %306 = vmatprep.subr.bf16.mxu0 %v288
    %307 = vmatpush1.bf16.msra.mxu0 %v287
    %308 = vmatprep.subr.bf16.mxu0 0
    %309 = vmatpush1.bf16.msra.mxu0 0
    %310 = vmatprep.subr.bf16.mxu0 0
    %311 = vmatpush1.bf16.msra.mxu0 0
    %312 = vmatprep.subr.bf16.mxu0 0
    %313 = vmatpush1.bf16.msra.mxu0 0
    %314 = vmatprep.subr.bf16.mxu0 0
    %315 = vmatpush1.bf16.msra.mxu0 0
    %316 = vmatprep.subr.bf16.mxu0 0
    %317 = vmatpush1.bf16.msra.mxu0 0
    %318 = vmatprep.subr.bf16.mxu0 0
    %319 = vmatpush1.bf16.msra.mxu0 0
    %320 = vmatprep.subr.bf16.mxu0 0
    %321 = vmatpush1.bf16.msra.mxu0 0
    %322 = vmatprep.subr.bf16.mxu0 0
    %323 = vmatpush1.bf16.msra.mxu0 0
    %324 = vmatprep.subr.bf16.mxu0 0
    %325 = vmatpush1.bf16.msra.mxu0 0
    %326 = vmatprep.subr.bf16.mxu0 0
    %327 = vmatpush1.bf16.msra.mxu0 0
    %328 = vmatprep.subr.bf16.mxu0 0
    %329 = vmatpush1.bf16.msra.mxu0 0
    %330 = vmatprep.subr.bf16.mxu0 0
    %331 = vmatpush1.bf16.msra.mxu0 0
    %332 = vmatprep.mubr.bf16.mxu0 0
    %333 = vmatmul.mubr.bf16.gmra.mrb[0].mxu0 %v298
    %v334 = vpop.f32.mrb[0].mxu0
    %v335 = vadd.f32 0.0, %v334
    %v336 = vpop.f32.mrb[0].mxu0
    %v337 = vadd.f32 0.0, %v336
    %v338 = vpop.f32.mrb[0].mxu0
    %v339 = vpop.f32.mrb[0].mxu0
    %340 = vdwg.mxu0
    %v341 = vadd.f32 %v253, %v335
    %v342 = vadd.f32 %v254, %v337
    %v343 = vxor.u32 %v341, 2147483648
    %v344 = vxor.u32 %v342, 2147483648
    %v345 = vmul.f32 %v343, 1.442695
    %v346 = vpow.pop %v345
    %v347 = vmul.f32 %v344, 1.442695
    %v348 = vpow.pop %v347
    %v349 = vadd.f32 %v346, 1.0
    %v350 = vadd.f32 %v348, 1.0
    %v351 = vrcp.pop %v349
    %v352 = vmul.f32 1.0, %v351
    %v353 = vrcp.pop %v350
    %v354 = vmul.f32 1.0, %v353
    %v355 = vtanh.pop %v342
    %v356 = vld [vmem:[#allocation4] sm:$0xff]
    %358 = vrot.lane.b32.xlu0 %v356, 64
    %v359 = vpop.permute.xlu0 %358
    %v361 = vmul.f32 %v352, %v359
    %363 = vrot.lane.b32.xlu0 %v355, 64
    %v364 = vpop.permute.xlu0 %363
    %v366 = vmul.f32 %v352, %v364
    %368 = vrot.lane.b32.xlu0 %v366, 64
    %v369 = vpop.permute.xlu0 %368
    %v371 = vadd.f32 %v361, %v369
    %v372 = vtanh.pop %v371
    %374 = vrot.lane.b32.xlu0 %v372, 64
    %v375 = vpop.permute.xlu0 %374
    %v377 = vmul.f32 %v354, %v375
    %379 = vrot.lane.b32.xlu0 %v371, 64
    %v380 = vpop.permute.xlu0 %379
    %382 = vst.msk [vmem:[#allocation4] sm:$0xff] %vm236, %v380
    %383 = vst.msk [vmem:[#allocation3] sm:$0xff] %vm236, %v377
    %vm384 = vcmp.eq.s32.totalorder %v241, 0
    %v385 = vld [vmem:[#allocation5] sm:$0xff]
    %v386 = vsel %vm384, 1, 0
    %387 = vset.pattern.permute.xlu0 0
    %388 = vperm.xlu0 %387, %v386
    %v389 = vpop.permute.xlu0 %388
    %vm390 = vcmp.eq.s32.totalorder %v389, 1
    %v391 = vsel %vm390, %v377, %v385
    %392 = vst.msk [vmem:[#allocation5] sm:$0xff] %vm236, %v391
    %s393 = smul.u32 1, 2
    %s394 = smul.addr %s393, 8
    %s395 = scalar_lea.vmem [#allocation2], %s394
    %v396 = vld [vmem:[%s395] sm:$0xff]
    %v397 = vld [vmem:[%s395 + $0x8] sm:$0xff]
    %v398 = vld [vmem:[#allocation3] sm:$0xff]
    %v399 = vpack.c.bf16 %v398, %v398
    %v401 = vsel %vm236, %v399, 0
    %403 = vmatprep.subr.bf16.mxu0 %v282
    %404 = vmatpush1.bf16.msra.mxu0 %v281
    %405 = vmatprep.subr.bf16.mxu0 %v284
    %406 = vmatpush1.bf16.msra.mxu0 %v283
    %407 = vmatprep.subr.bf16.mxu0 %v286
    %408 = vmatpush1.bf16.msra.mxu0 %v285
    %409 = vmatprep.subr.bf16.mxu0 %v288
    %410 = vmatpush1.bf16.msra.mxu0 %v287
    %411 = vmatprep.subr.bf16.mxu0 0
    %412 = vmatpush1.bf16.msra.mxu0 0
    %413 = vmatprep.subr.bf16.mxu0 0
    %414 = vmatpush1.bf16.msra.mxu0 0
    %415 = vmatprep.subr.bf16.mxu0 0
    %416 = vmatpush1.bf16.msra.mxu0 0
    %417 = vmatprep.subr.bf16.mxu0 0
    %418 = vmatpush1.bf16.msra.mxu0 0
    %419 = vmatprep.subr.bf16.mxu0 0
    %420 = vmatpush1.bf16.msra.mxu0 0
    %421 = vmatprep.subr.bf16.mxu0 0
    %422 = vmatpush1.bf16.msra.mxu0 0
    %423 = vmatprep.subr.bf16.mxu0 0
    %424 = vmatpush1.bf16.msra.mxu0 0
    %425 = vmatprep.subr.bf16.mxu0 0
    %426 = vmatpush1.bf16.msra.mxu0 0
    %427 = vmatprep.subr.bf16.mxu0 0
    %428 = vmatpush1.bf16.msra.mxu0 0
    %429 = vmatprep.subr.bf16.mxu0 0
    %430 = vmatpush1.bf16.msra.mxu0 0
    %431 = vmatprep.subr.bf16.mxu0 0
    %432 = vmatpush1.bf16.msra.mxu0 0
    %433 = vmatprep.subr.bf16.mxu0 0
    %434 = vmatpush1.bf16.msra.mxu0 0
    %435 = vmatprep.mubr.bf16.mxu0 0
    %436 = vmatmul.mubr.bf16.gmra.mrb[0].mxu0 %v401
    %v437 = vpop.f32.mrb[0].mxu0
    %v438 = vadd.f32 0.0, %v437
    %v439 = vpop.f32.mrb[0].mxu0
    %v440 = vadd.f32 0.0, %v439
    %v441 = vpop.f32.mrb[0].mxu0
    %v442 = vpop.f32.mrb[0].mxu0
    %443 = vdwg.mxu0
    %v444 = vadd.f32 %v396, %v438
    %v445 = vadd.f32 %v397, %v440
    %v446 = vxor.u32 %v444, 2147483648
    %v447 = vxor.u32 %v445, 2147483648
    %v448 = vmul.f32 %v446, 1.442695
    %v449 = vpow.pop %v448
    %v450 = vmul.f32 %v447, 1.442695
    %v451 = vpow.pop %v450
    %v452 = vadd.f32 %v449, 1.0
    %v453 = vadd.f32 %v451, 1.0
    %v454 = vrcp.pop %v452
    %v455 = vmul.f32 1.0, %v454
    %v456 = vrcp.pop %v453
    %v457 = vmul.f32 1.0, %v456
    %v458 = vtanh.pop %v445
    %v459 = vld [vmem:[#allocation4] sm:$0xff]
    %461 = vrot.lane.b32.xlu0 %v459, 64
    %v462 = vpop.permute.xlu0 %461
    %v464 = vmul.f32 %v455, %v462
    %466 = vrot.lane.b32.xlu0 %v458, 64
    %v467 = vpop.permute.xlu0 %466
    %v469 = vmul.f32 %v455, %v467
    %471 = vrot.lane.b32.xlu0 %v469, 64
    %v472 = vpop.permute.xlu0 %471
    %v474 = vadd.f32 %v464, %v472
    %v475 = vtanh.pop %v474
    %477 = vrot.lane.b32.xlu0 %v475, 64
    %v478 = vpop.permute.xlu0 %477
    %v480 = vmul.f32 %v457, %v478
    %482 = vrot.lane.b32.xlu0 %v474, 64
    %v483 = vpop.permute.xlu0 %482
    %485 = vst.msk [vmem:[#allocation4] sm:$0xff] %vm236, %v483
    %486 = vst.msk [vmem:[#allocation3] sm:$0xff] %vm236, %v480
    %vm487 = vcmp.eq.s32.totalorder %v241, 1
    %v488 = vld [vmem:[#allocation5] sm:$0xff]
    %v489 = vsel %vm487, 1, 0
    %490 = vset.pattern.permute.xlu0 0
    %491 = vperm.xlu0 %490, %v489
    %v492 = vpop.permute.xlu0 %491
    %vm493 = vcmp.eq.s32.totalorder %v492, 1
    %v494 = vsel %vm493, %v480, %v488
    %495 = vst.msk [vmem:[#allocation5] sm:$0xff] %vm236, %v494
    %s496 = smul.u32 2, 2
    %s497 = smul.addr %s496, 8
    %s498 = scalar_lea.vmem [#allocation2], %s497
    %v499 = vld [vmem:[%s498] sm:$0xff]
    %v500 = vld [vmem:[%s498 + $0x8] sm:$0xff]
    %v501 = vld [vmem:[#allocation3] sm:$0xff]
    %v502 = vpack.c.bf16 %v501, %v501
    %v504 = vsel %vm236, %v502, 0
    %506 = vmatprep.subr.bf16.mxu0 %v282
    %507 = vmatpush1.bf16.msra.mxu0 %v281
    %508 = vmatprep.subr.bf16.mxu0 %v284
    %509 = vmatpush1.bf16.msra.mxu0 %v283
    %510 = vmatprep.subr.bf16.mxu0 %v286
    %511 = vmatpush1.bf16.msra.mxu0 %v285
    %512 = vmatprep.subr.bf16.mxu0 %v288
    %513 = vmatpush1.bf16.msra.mxu0 %v287
    %514 = vmatprep.subr.bf16.mxu0 0
    %515 = vmatpush1.bf16.msra.mxu0 0
    %516 = vmatprep.subr.bf16.mxu0 0
    %517 = vmatpush1.bf16.msra.mxu0 0
    %518 = vmatprep.subr.bf16.mxu0 0
    %519 = vmatpush1.bf16.msra.mxu0 0
    %520 = vmatprep.subr.bf16.mxu0 0
    %521 = vmatpush1.bf16.msra.mxu0 0
    %522 = vmatprep.subr.bf16.mxu0 0
    %523 = vmatpush1.bf16.msra.mxu0 0
    %524 = vmatprep.subr.bf16.mxu0 0
    %525 = vmatpush1.bf16.msra.mxu0 0
    %526 = vmatprep.subr.bf16.mxu0 0
    %527 = vmatpush1.bf16.msra.mxu0 0
    %528 = vmatprep.subr.bf16.mxu0 0
    %529 = vmatpush1.bf16.msra.mxu0 0
    %530 = vmatprep.subr.bf16.mxu0 0
    %531 = vmatpush1.bf16.msra.mxu0 0
    %532 = vmatprep.subr.bf16.mxu0 0
    %533 = vmatpush1.bf16.msra.mxu0 0
    %534 = vmatprep.subr.bf16.mxu0 0
    %535 = vmatpush1.bf16.msra.mxu0 0
    %536 = vmatprep.subr.bf16.mxu0 0
    %537 = vmatpush1.bf16.msra.mxu0 0
    %538 = vmatprep.mubr.bf16.mxu0 0
    %539 = vmatmul.mubr.bf16.gmra.mrb[0].mxu0 %v504
    %v540 = vpop.f32.mrb[0].mxu0
    %v541 = vadd.f32 0.0, %v540
    %v542 = vpop.f32.mrb[0].mxu0
    %v543 = vadd.f32 0.0, %v542
    %v544 = vpop.f32.mrb[0].mxu0
    %v545 = vpop.f32.mrb[0].mxu0
    %546 = vdwg.mxu0
    %v547 = vadd.f32 %v499, %v541
    %v548 = vadd.f32 %v500, %v543
    %v549 = vxor.u32 %v547, 2147483648
    %v550 = vxor.u32 %v548, 2147483648
    %v551 = vmul.f32 %v549, 1.442695
    %v552 = vpow.pop %v551
    %v553 = vmul.f32 %v550, 1.442695
    %v554 = vpow.pop %v553
    %v555 = vadd.f32 %v552, 1.0
    %v556 = vadd.f32 %v554, 1.0
    %v557 = vrcp.pop %v555
    %v558 = vmul.f32 1.0, %v557
    %v559 = vrcp.pop %v556
    %v560 = vmul.f32 1.0, %v559
    %v561 = vtanh.pop %v548
    %v562 = vld [vmem:[#allocation4] sm:$0xff]
    %564 = vrot.lane.b32.xlu0 %v562, 64
    %v565 = vpop.permute.xlu0 %564
    %v567 = vmul.f32 %v558, %v565
    %569 = vrot.lane.b32.xlu0 %v561, 64
    %v570 = vpop.permute.xlu0 %569
    %v572 = vmul.f32 %v558, %v570
    %574 = vrot.lane.b32.xlu0 %v572, 64
    %v575 = vpop.permute.xlu0 %574
    %v577 = vadd.f32 %v567, %v575
    %v578 = vtanh.pop %v577
    %580 = vrot.lane.b32.xlu0 %v578, 64
    %v581 = vpop.permute.xlu0 %580
    %v583 = vmul.f32 %v560, %v581
    %585 = vrot.lane.b32.xlu0 %v577, 64
    %v586 = vpop.permute.xlu0 %585
    %588 = vst.msk [vmem:[#allocation4] sm:$0xff] %vm236, %v586
    %589 = vst.msk [vmem:[#allocation3] sm:$0xff] %vm236, %v583
    %vm590 = vcmp.eq.s32.totalorder %v241, 2
    %v591 = vld [vmem:[#allocation5] sm:$0xff]
    %v592 = vsel %vm590, 1, 0
    %593 = vset.pattern.permute.xlu0 0
    %594 = vperm.xlu0 %593, %v592
    %v595 = vpop.permute.xlu0 %594
    %vm596 = vcmp.eq.s32.totalorder %v595, 1
    %v597 = vsel %vm596, %v583, %v591
    %598 = vst.msk [vmem:[#allocation5] sm:$0xff] %vm236, %v597
    %s599 = smul.u32 3, 2
    %s600 = smul.addr %s599, 8
    %s601 = scalar_lea.vmem [#allocation2], %s600
    %v602 = vld [vmem:[%s601] sm:$0xff]
    %v603 = vld [vmem:[%s601 + $0x8] sm:$0xff]
    %v604 = vld [vmem:[#allocation3] sm:$0xff]
    %v605 = vpack.c.bf16 %v604, %v604
    %v607 = vsel %vm236, %v605, 0
    %609 = vmatprep.subr.bf16.mxu0 %v282
    %610 = vmatpush1.bf16.msra.mxu0 %v281
    %611 = vmatprep.subr.bf16.mxu0 %v284
    %612 = vmatpush1.bf16.msra.mxu0 %v283
    %613 = vmatprep.subr.bf16.mxu0 %v286
    %614 = vmatpush1.bf16.msra.mxu0 %v285
    %615 = vmatprep.subr.bf16.mxu0 %v288
    %616 = vmatpush1.bf16.msra.mxu0 %v287
    %617 = vmatprep.subr.bf16.mxu0 0
    %618 = vmatpush1.bf16.msra.mxu0 0
    %619 = vmatprep.subr.bf16.mxu0 0
    %620 = vmatpush1.bf16.msra.mxu0 0
    %621 = vmatprep.subr.bf16.mxu0 0
    %622 = vmatpush1.bf16.msra.mxu0 0
    %623 = vmatprep.subr.bf16.mxu0 0
    %624 = vmatpush1.bf16.msra.mxu0 0
    %625 = vmatprep.subr.bf16.mxu0 0
    %626 = vmatpush1.bf16.msra.mxu0 0
    %627 = vmatprep.subr.bf16.mxu0 0
    %628 = vmatpush1.bf16.msra.mxu0 0
    %629 = vmatprep.subr.bf16.mxu0 0
    %630 = vmatpush1.bf16.msra.mxu0 0
    %631 = vmatprep.subr.bf16.mxu0 0
    %632 = vmatpush1.bf16.msra.mxu0 0
    %633 = vmatprep.subr.bf16.mxu0 0
    %634 = vmatpush1.bf16.msra.mxu0 0
    %635 = vmatprep.subr.bf16.mxu0 0
    %636 = vmatpush1.bf16.msra.mxu0 0
    %637 = vmatprep.subr.bf16.mxu0 0
    %638 = vmatpush1.bf16.msra.mxu0 0
    %639 = vmatprep.subr.bf16.mxu0 0
    %640 = vmatpush1.bf16.msra.mxu0 0
    %641 = vmatprep.mubr.bf16.mxu0 0
    %642 = vmatmul.mubr.bf16.gmra.mrb[0].mxu0 %v607
    %v643 = vpop.f32.mrb[0].mxu0
    %v644 = vadd.f32 0.0, %v643
    %v645 = vpop.f32.mrb[0].mxu0
    %v646 = vadd.f32 0.0, %v645
    %v647 = vpop.f32.mrb[0].mxu0
    %v648 = vpop.f32.mrb[0].mxu0
    %649 = vdwg.mxu0
    %v650 = vadd.f32 %v602, %v644
    %v651 = vadd.f32 %v603, %v646
    %v652 = vxor.u32 %v650, 2147483648
    %v653 = vxor.u32 %v651, 2147483648
    %v654 = vmul.f32 %v652, 1.442695
    %v655 = vpow.pop %v654
    %v656 = vmul.f32 %v653, 1.442695
    %v657 = vpow.pop %v656
    %v658 = vadd.f32 %v655, 1.0
    %v659 = vadd.f32 %v657, 1.0
    %v660 = vrcp.pop %v658
    %v661 = vmul.f32 1.0, %v660
    %v662 = vrcp.pop %v659
    %v663 = vmul.f32 1.0, %v662
    %v664 = vtanh.pop %v651
    %v665 = vld [vmem:[#allocation4] sm:$0xff]
    %667 = vrot.lane.b32.xlu0 %v665, 64
    %v668 = vpop.permute.xlu0 %667
    %v670 = vmul.f32 %v661, %v668
    %672 = vrot.lane.b32.xlu0 %v664, 64
    %v673 = vpop.permute.xlu0 %672
    %v675 = vmul.f32 %v661, %v673
    %677 = vrot.lane.b32.xlu0 %v675, 64
    %v678 = vpop.permute.xlu0 %677
    %v680 = vadd.f32 %v670, %v678
    %v681 = vtanh.pop %v680
    %683 = vrot.lane.b32.xlu0 %v681, 64
    %v684 = vpop.permute.xlu0 %683
    %v686 = vmul.f32 %v663, %v684
    %688 = vrot.lane.b32.xlu0 %v680, 64
    %v689 = vpop.permute.xlu0 %688
    %691 = vst.msk [vmem:[#allocation4] sm:$0xff] %vm236, %v689
    %692 = vst.msk [vmem:[#allocation3] sm:$0xff] %vm236, %v686
    %vm693 = vcmp.eq.s32.totalorder %v241, 3
    %v694 = vld [vmem:[#allocation5] sm:$0xff]
    %v695 = vsel %vm693, 1, 0
    %696 = vset.pattern.permute.xlu0 0
    %697 = vperm.xlu0 %696, %v695
    %v698 = vpop.permute.xlu0 %697
    %vm699 = vcmp.eq.s32.totalorder %v698, 1
    %v700 = vsel %vm699, %v686, %v694
    %701 = vst.msk [vmem:[#allocation5] sm:$0xff] %vm236, %v700
    %s702 = smul.u32 4, 2
    %s703 = smul.addr %s702, 8
    %s704 = scalar_lea.vmem [#allocation2], %s703
    %v705 = vld [vmem:[%s704] sm:$0xff]
    %v706 = vld [vmem:[%s704 + $0x8] sm:$0xff]
    %v707 = vld [vmem:[#allocation3] sm:$0xff]
    %v708 = vpack.c.bf16 %v707, %v707
    %v710 = vsel %vm236, %v708, 0
    %712 = vmatprep.subr.bf16.mxu0 %v282
    %713 = vmatpush1.bf16.msra.mxu0 %v281
    %714 = vmatprep.subr.bf16.mxu0 %v284
    %715 = vmatpush1.bf16.msra.mxu0 %v283
    %716 = vmatprep.subr.bf16.mxu0 %v286
    %717 = vmatpush1.bf16.msra.mxu0 %v285
    %718 = vmatprep.subr.bf16.mxu0 %v288
    %719 = vmatpush1.bf16.msra.mxu0 %v287
    %720 = vmatprep.subr.bf16.mxu0 0
    %721 = vmatpush1.bf16.msra.mxu0 0
    %722 = vmatprep.subr.bf16.mxu0 0
    %723 = vmatpush1.bf16.msra.mxu0 0
    %724 = vmatprep.subr.bf16.mxu0 0
    %725 = vmatpush1.bf16.msra.mxu0 0
    %726 = vmatprep.subr.bf16.mxu0 0
    %727 = vmatpush1.bf16.msra.mxu0 0
    %728 = vmatprep.subr.bf16.mxu0 0
    %729 = vmatpush1.bf16.msra.mxu0 0
    %730 = vmatprep.subr.bf16.mxu0 0
    %731 = vmatpush1.bf16.msra.mxu0 0
    %732 = vmatprep.subr.bf16.mxu0 0
    %733 = vmatpush1.bf16.msra.mxu0 0
    %734 = vmatprep.subr.bf16.mxu0 0
    %735 = vmatpush1.bf16.msra.mxu0 0
    %736 = vmatprep.subr.bf16.mxu0 0
    %737 = vmatpush1.bf16.msra.mxu0 0
    %738 = vmatprep.subr.bf16.mxu0 0
    %739 = vmatpush1.bf16.msra.mxu0 0
    %740 = vmatprep.subr.bf16.mxu0 0
    %741 = vmatpush1.bf16.msra.mxu0 0
    %742 = vmatprep.subr.bf16.mxu0 0
    %743 = vmatpush1.bf16.msra.mxu0 0
    %744 = vmatprep.mubr.bf16.mxu0 0
    %745 = vmatmul.mubr.bf16.gmra.mrb[0].mxu0 %v710
    %v746 = vpop.f32.mrb[0].mxu0
    %v747 = vadd.f32 0.0, %v746
    %v748 = vpop.f32.mrb[0].mxu0
    %v749 = vadd.f32 0.0, %v748
    %v750 = vpop.f32.mrb[0].mxu0
    %v751 = vpop.f32.mrb[0].mxu0
    %752 = vdwg.mxu0
    %v753 = vadd.f32 %v705, %v747
    %v754 = vadd.f32 %v706, %v749
    %v755 = vxor.u32 %v753, 2147483648
    %v756 = vxor.u32 %v754, 2147483648
    %v757 = vmul.f32 %v755, 1.442695
    %v758 = vpow.pop %v757
    %v759 = vmul.f32 %v756, 1.442695
    %v760 = vpow.pop %v759
    %v761 = vadd.f32 %v758, 1.0
    %v762 = vadd.f32 %v760, 1.0
    %v763 = vrcp.pop %v761
    %v764 = vmul.f32 1.0, %v763
    %v765 = vrcp.pop %v762
    %v766 = vmul.f32 1.0, %v765
    %v767 = vtanh.pop %v754
    %v768 = vld [vmem:[#allocation4] sm:$0xff]
    %770 = vrot.lane.b32.xlu0 %v768, 64
    %v771 = vpop.permute.xlu0 %770
    %v773 = vmul.f32 %v764, %v771
    %775 = vrot.lane.b32.xlu0 %v767, 64
    %v776 = vpop.permute.xlu0 %775
    %v778 = vmul.f32 %v764, %v776
    %780 = vrot.lane.b32.xlu0 %v778, 64
    %v781 = vpop.permute.xlu0 %780
    %v783 = vadd.f32 %v773, %v781
    %v784 = vtanh.pop %v783
    %786 = vrot.lane.b32.xlu0 %v784, 64
    %v787 = vpop.permute.xlu0 %786
    %v789 = vmul.f32 %v766, %v787
    %791 = vrot.lane.b32.xlu0 %v783, 64
    %v792 = vpop.permute.xlu0 %791
    %794 = vst.msk [vmem:[#allocation4] sm:$0xff] %vm236, %v792
    %795 = vst.msk [vmem:[#allocation3] sm:$0xff] %vm236, %v789
    %vm796 = vcmp.eq.s32.totalorder %v241, 4
    %v797 = vld [vmem:[#allocation5] sm:$0xff]
    %v798 = vsel %vm796, 1, 0
    %799 = vset.pattern.permute.xlu0 0
    %800 = vperm.xlu0 %799, %v798
    %v801 = vpop.permute.xlu0 %800
    %vm802 = vcmp.eq.s32.totalorder %v801, 1
    %v803 = vsel %vm802, %v789, %v797
    %804 = vst.msk [vmem:[#allocation5] sm:$0xff] %vm236, %v803
    %s805 = smul.u32 5, 2
    %s806 = smul.addr %s805, 8
    %s807 = scalar_lea.vmem [#allocation2], %s806
    %v808 = vld [vmem:[%s807] sm:$0xff]
    %v809 = vld [vmem:[%s807 + $0x8] sm:$0xff]
    %v810 = vld [vmem:[#allocation3] sm:$0xff]
    %v811 = vpack.c.bf16 %v810, %v810
    %v813 = vsel %vm236, %v811, 0
    %815 = vmatprep.subr.bf16.mxu0 %v282
    %816 = vmatpush1.bf16.msra.mxu0 %v281
    %817 = vmatprep.subr.bf16.mxu0 %v284
    %818 = vmatpush1.bf16.msra.mxu0 %v283
    %819 = vmatprep.subr.bf16.mxu0 %v286
    %820 = vmatpush1.bf16.msra.mxu0 %v285
    %821 = vmatprep.subr.bf16.mxu0 %v288
    %822 = vmatpush1.bf16.msra.mxu0 %v287
    %823 = vmatprep.subr.bf16.mxu0 0
    %824 = vmatpush1.bf16.msra.mxu0 0
    %825 = vmatprep.subr.bf16.mxu0 0
    %826 = vmatpush1.bf16.msra.mxu0 0
    %827 = vmatprep.subr.bf16.mxu0 0
    %828 = vmatpush1.bf16.msra.mxu0 0
    %829 = vmatprep.subr.bf16.mxu0 0
    %830 = vmatpush1.bf16.msra.mxu0 0
    %831 = vmatprep.subr.bf16.mxu0 0
    %832 = vmatpush1.bf16.msra.mxu0 0
    %833 = vmatprep.subr.bf16.mxu0 0
    %834 = vmatpush1.bf16.msra.mxu0 0
    %835 = vmatprep.subr.bf16.mxu0 0
    %836 = vmatpush1.bf16.msra.mxu0 0
    %837 = vmatprep.subr.bf16.mxu0 0
    %838 = vmatpush1.bf16.msra.mxu0 0
    %839 = vmatprep.subr.bf16.mxu0 0
    %840 = vmatpush1.bf16.msra.mxu0 0
    %841 = vmatprep.subr.bf16.mxu0 0
    %842 = vmatpush1.bf16.msra.mxu0 0
    %843 = vmatprep.subr.bf16.mxu0 0
    %844 = vmatpush1.bf16.msra.mxu0 0
    %845 = vmatprep.subr.bf16.mxu0 0
    %846 = vmatpush1.bf16.msra.mxu0 0
    %847 = vmatprep.mubr.bf16.mxu0 0
    %848 = vmatmul.mubr.bf16.gmra.mrb[0].mxu0 %v813
    %v849 = vpop.f32.mrb[0].mxu0
    %v850 = vadd.f32 0.0, %v849
    %v851 = vpop.f32.mrb[0].mxu0
    %v852 = vadd.f32 0.0, %v851
    %v853 = vpop.f32.mrb[0].mxu0
    %v854 = vpop.f32.mrb[0].mxu0
    %855 = vdwg.mxu0
    %v856 = vadd.f32 %v808, %v850
    %v857 = vadd.f32 %v809, %v852
    %v858 = vxor.u32 %v856, 2147483648
    %v859 = vxor.u32 %v857, 2147483648
    %v860 = vmul.f32 %v858, 1.442695
    %v861 = vpow.pop %v860
    %v862 = vmul.f32 %v859, 1.442695
    %v863 = vpow.pop %v862
    %v864 = vadd.f32 %v861, 1.0
    %v865 = vadd.f32 %v863, 1.0
    %v866 = vrcp.pop %v864
    %v867 = vmul.f32 1.0, %v866
    %v868 = vrcp.pop %v865
    %v869 = vmul.f32 1.0, %v868
    %v870 = vtanh.pop %v857
    %v871 = vld [vmem:[#allocation4] sm:$0xff]
    %873 = vrot.lane.b32.xlu0 %v871, 64
    %v874 = vpop.permute.xlu0 %873
    %v876 = vmul.f32 %v867, %v874
    %878 = vrot.lane.b32.xlu0 %v870, 64
    %v879 = vpop.permute.xlu0 %878
    %v881 = vmul.f32 %v867, %v879
    %883 = vrot.lane.b32.xlu0 %v881, 64
    %v884 = vpop.permute.xlu0 %883
    %v886 = vadd.f32 %v876, %v884
    %v887 = vtanh.pop %v886
    %889 = vrot.lane.b32.xlu0 %v887, 64
    %v890 = vpop.permute.xlu0 %889
    %v892 = vmul.f32 %v869, %v890
    %894 = vrot.lane.b32.xlu0 %v886, 64
    %v895 = vpop.permute.xlu0 %894
    %897 = vst.msk [vmem:[#allocation4] sm:$0xff] %vm236, %v895
    %898 = vst.msk [vmem:[#allocation3] sm:$0xff] %vm236, %v892
    %vm899 = vcmp.eq.s32.totalorder %v241, 5
    %v900 = vld [vmem:[#allocation5] sm:$0xff]
    %v901 = vsel %vm899, 1, 0
    %902 = vset.pattern.permute.xlu0 0
    %903 = vperm.xlu0 %902, %v901
    %v904 = vpop.permute.xlu0 %903
    %vm905 = vcmp.eq.s32.totalorder %v904, 1
    %v906 = vsel %vm905, %v892, %v900
    %907 = vst.msk [vmem:[#allocation5] sm:$0xff] %vm236, %v906
    %s908 = smul.u32 6, 2
    %s909 = smul.addr %s908, 8
    %s910 = scalar_lea.vmem [#allocation2], %s909
    %v911 = vld [vmem:[%s910] sm:$0xff]
    %v912 = vld [vmem:[%s910 + $0x8] sm:$0xff]
    %v913 = vld [vmem:[#allocation3] sm:$0xff]
    %v914 = vpack.c.bf16 %v913, %v913
    %v916 = vsel %vm236, %v914, 0
    %918 = vmatprep.subr.bf16.mxu0 %v282
    %919 = vmatpush1.bf16.msra.mxu0 %v281
    %920 = vmatprep.subr.bf16.mxu0 %v284
    %921 = vmatpush1.bf16.msra.mxu0 %v283
    %922 = vmatprep.subr.bf16.mxu0 %v286
    %923 = vmatpush1.bf16.msra.mxu0 %v285
    %924 = vmatprep.subr.bf16.mxu0 %v288
    %925 = vmatpush1.bf16.msra.mxu0 %v287
    %926 = vmatprep.subr.bf16.mxu0 0
    %927 = vmatpush1.bf16.msra.mxu0 0
    %928 = vmatprep.subr.bf16.mxu0 0
    %929 = vmatpush1.bf16.msra.mxu0 0
    %930 = vmatprep.subr.bf16.mxu0 0
    %931 = vmatpush1.bf16.msra.mxu0 0
    %932 = vmatprep.subr.bf16.mxu0 0
    %933 = vmatpush1.bf16.msra.mxu0 0
    %934 = vmatprep.subr.bf16.mxu0 0
    %935 = vmatpush1.bf16.msra.mxu0 0
    %936 = vmatprep.subr.bf16.mxu0 0
    %937 = vmatpush1.bf16.msra.mxu0 0
    %938 = vmatprep.subr.bf16.mxu0 0
    %939 = vmatpush1.bf16.msra.mxu0 0
    %940 = vmatprep.subr.bf16.mxu0 0
    %941 = vmatpush1.bf16.msra.mxu0 0
    %942 = vmatprep.subr.bf16.mxu0 0
    %943 = vmatpush1.bf16.msra.mxu0 0
    %944 = vmatprep.subr.bf16.mxu0 0
    %945 = vmatpush1.bf16.msra.mxu0 0
    %946 = vmatprep.subr.bf16.mxu0 0
    %947 = vmatpush1.bf16.msra.mxu0 0
    %948 = vmatprep.subr.bf16.mxu0 0
    %949 = vmatpush1.bf16.msra.mxu0 0
    %950 = vmatprep.mubr.bf16.mxu0 0
    %951 = vmatmul.mubr.bf16.gmra.mrb[0].mxu0 %v916
    %v952 = vpop.f32.mrb[0].mxu0
    %v953 = vadd.f32 0.0, %v952
    %v954 = vpop.f32.mrb[0].mxu0
    %v955 = vadd.f32 0.0, %v954
    %v956 = vpop.f32.mrb[0].mxu0
    %v957 = vpop.f32.mrb[0].mxu0
    %958 = vdwg.mxu0
    %v959 = vadd.f32 %v911, %v953
    %v960 = vadd.f32 %v912, %v955
    %v961 = vxor.u32 %v959, 2147483648
    %v962 = vxor.u32 %v960, 2147483648
    %v963 = vmul.f32 %v961, 1.442695
    %v964 = vpow.pop %v963
    %v965 = vmul.f32 %v962, 1.442695
    %v966 = vpow.pop %v965
    %v967 = vadd.f32 %v964, 1.0
    %v968 = vadd.f32 %v966, 1.0
    %v969 = vrcp.pop %v967
    %v970 = vmul.f32 1.0, %v969
    %v971 = vrcp.pop %v968
    %v972 = vmul.f32 1.0, %v971
    %v973 = vtanh.pop %v960
    %v974 = vld [vmem:[#allocation4] sm:$0xff]
    %976 = vrot.lane.b32.xlu0 %v974, 64
    %v977 = vpop.permute.xlu0 %976
    %v979 = vmul.f32 %v970, %v977
    %981 = vrot.lane.b32.xlu0 %v973, 64
    %v982 = vpop.permute.xlu0 %981
    %v984 = vmul.f32 %v970, %v982
    %986 = vrot.lane.b32.xlu0 %v984, 64
    %v987 = vpop.permute.xlu0 %986
    %v989 = vadd.f32 %v979, %v987
    %v990 = vtanh.pop %v989
    %992 = vrot.lane.b32.xlu0 %v990, 64
    %v993 = vpop.permute.xlu0 %992
    %v995 = vmul.f32 %v972, %v993
    %997 = vrot.lane.b32.xlu0 %v989, 64
    %v998 = vpop.permute.xlu0 %997
    %1000 = vst.msk [vmem:[#allocation4] sm:$0xff] %vm236, %v998
    %1001 = vst.msk [vmem:[#allocation3] sm:$0xff] %vm236, %v995
    %vm1002 = vcmp.eq.s32.totalorder %v241, 6
    %v1003 = vld [vmem:[#allocation5] sm:$0xff]
    %v1004 = vsel %vm1002, 1, 0
    %1005 = vset.pattern.permute.xlu0 0
    %1006 = vperm.xlu0 %1005, %v1004
    %v1007 = vpop.permute.xlu0 %1006
    %vm1008 = vcmp.eq.s32.totalorder %v1007, 1
    %v1009 = vsel %vm1008, %v995, %v1003
    %1010 = vst.msk [vmem:[#allocation5] sm:$0xff] %vm236, %v1009
    %s1011 = smul.u32 7, 2
    %s1012 = smul.addr %s1011, 8
    %s1013 = scalar_lea.vmem [#allocation2], %s1012
    %v1014 = vld [vmem:[%s1013] sm:$0xff]
    %v1015 = vld [vmem:[%s1013 + $0x8] sm:$0xff]
    %v1016 = vld [vmem:[#allocation3] sm:$0xff]
    %v1017 = vpack.c.bf16 %v1016, %v1016
    %v1019 = vsel %vm236, %v1017, 0
    %1021 = vmatprep.subr.bf16.mxu0 %v282
    %1022 = vmatpush1.bf16.msra.mxu0 %v281
    %1023 = vmatprep.subr.bf16.mxu0 %v284
    %1024 = vmatpush1.bf16.msra.mxu0 %v283
    %1025 = vmatprep.subr.bf16.mxu0 %v286
    %1026 = vmatpush1.bf16.msra.mxu0 %v285
    %1027 = vmatprep.subr.bf16.mxu0 %v288
    %1028 = vmatpush1.bf16.msra.mxu0 %v287
    %1029 = vmatprep.subr.bf16.mxu0 0
    %1030 = vmatpush1.bf16.msra.mxu0 0
    %1031 = vmatprep.subr.bf16.mxu0 0
    %1032 = vmatpush1.bf16.msra.mxu0 0
    %1033 = vmatprep.subr.bf16.mxu0 0
    %1034 = vmatpush1.bf16.msra.mxu0 0
    %1035 = vmatprep.subr.bf16.mxu0 0
    %1036 = vmatpush1.bf16.msra.mxu0 0
    %1037 = vmatprep.subr.bf16.mxu0 0
    %1038 = vmatpush1.bf16.msra.mxu0 0
    %1039 = vmatprep.subr.bf16.mxu0 0
    %1040 = vmatpush1.bf16.msra.mxu0 0
    %1041 = vmatprep.subr.bf16.mxu0 0
    %1042 = vmatpush1.bf16.msra.mxu0 0
    %1043 = vmatprep.subr.bf16.mxu0 0
    %1044 = vmatpush1.bf16.msra.mxu0 0
    %1045 = vmatprep.subr.bf16.mxu0 0
    %1046 = vmatpush1.bf16.msra.mxu0 0
    %1047 = vmatprep.subr.bf16.mxu0 0
    %1048 = vmatpush1.bf16.msra.mxu0 0
    %1049 = vmatprep.subr.bf16.mxu0 0
    %1050 = vmatpush1.bf16.msra.mxu0 0
    %1051 = vmatprep.subr.bf16.mxu0 0
    %1052 = vmatpush1.bf16.msra.mxu0 0
    %1053 = vmatprep.mubr.bf16.mxu0 0
    %1054 = vmatmul.mubr.bf16.gmra.mrb[0].mxu0 %v1019
    %v1055 = vpop.f32.mrb[0].mxu0
    %v1056 = vadd.f32 0.0, %v1055
    %v1057 = vpop.f32.mrb[0].mxu0
    %v1058 = vadd.f32 0.0, %v1057
    %v1059 = vpop.f32.mrb[0].mxu0
    %v1060 = vpop.f32.mrb[0].mxu0
    %1061 = vdwg.mxu0
    %v1062 = vadd.f32 %v1014, %v1056
    %v1063 = vadd.f32 %v1015, %v1058
    %v1064 = vxor.u32 %v1062, 2147483648
    %v1065 = vxor.u32 %v1063, 2147483648
    %v1066 = vmul.f32 %v1064, 1.442695
    %v1067 = vpow.pop %v1066
    %v1068 = vmul.f32 %v1065, 1.442695
    %v1069 = vpow.pop %v1068
    %v1070 = vadd.f32 %v1067, 1.0
    %v1071 = vadd.f32 %v1069, 1.0
    %v1072 = vrcp.pop %v1070
    %v1073 = vmul.f32 1.0, %v1072
    %v1074 = vrcp.pop %v1071
    %v1075 = vmul.f32 1.0, %v1074
    %v1076 = vtanh.pop %v1063
    %v1077 = vld [vmem:[#allocation4] sm:$0xff]
    %1079 = vrot.lane.b32.xlu0 %v1077, 64
    %v1080 = vpop.permute.xlu0 %1079
    %v1082 = vmul.f32 %v1073, %v1080
    %1084 = vrot.lane.b32.xlu0 %v1076, 64
    %v1085 = vpop.permute.xlu0 %1084
    %v1087 = vmul.f32 %v1073, %v1085
    %1089 = vrot.lane.b32.xlu0 %v1087, 64
    %v1090 = vpop.permute.xlu0 %1089
    %v1092 = vadd.f32 %v1082, %v1090
    %v1093 = vtanh.pop %v1092
    %1095 = vrot.lane.b32.xlu0 %v1093, 64
    %v1096 = vpop.permute.xlu0 %1095
    %v1098 = vmul.f32 %v1075, %v1096
    %1100 = vrot.lane.b32.xlu0 %v1092, 64
    %v1101 = vpop.permute.xlu0 %1100
    %1103 = vst.msk [vmem:[#allocation4] sm:$0xff] %vm236, %v1101
    %1104 = vst.msk [vmem:[#allocation3] sm:$0xff] %vm236, %v1098
    %vm1105 = vcmp.eq.s32.totalorder %v241, 7
    %v1106 = vld [vmem:[#allocation5] sm:$0xff]
    %v1107 = vsel %vm1105, 1, 0
    %1108 = vset.pattern.permute.xlu0 0
    %1109 = vperm.xlu0 %1108, %v1107
    %v1110 = vpop.permute.xlu0 %1109
    %vm1111 = vcmp.eq.s32.totalorder %v1110, 1
    %v1112 = vsel %vm1111, %v1098, %v1106
    %1113 = vst.msk [vmem:[#allocation5] sm:$0xff] %vm236, %v1112
    %v1114 = vld [vmem:[#allocation5] sm:$0xff]
    %v1115 = vpack.c.bf16 %v1114, %v1114
    %v1116 = vld [vmem:[%s5] sm:$0xf]
    %v1117 = vld [vmem:[%s5 + $0x4] sm:$0xf]
    %v1118 = vld [vmem:[%s5 + $0x8] sm:$0xf]
    %v1119 = vld [vmem:[%s5 + $0xc] sm:$0xf]
    %v1120 = vld [vmem:[%s5 + $0x10] sm:$0xf]
    %v1121 = vld [vmem:[%s5 + $0x14] sm:$0xf]
    %v1122 = vld [vmem:[%s5 + $0x18] sm:$0xf]
    %v1123 = vld [vmem:[%s5 + $0x1c] sm:$0xf]
    %v1124 = vld [vmem:[%s6] sm:$0x1]
    %v1126 = vlaneseq
    %v1127 = vshrl.u32 %v1126, 7
    %v1128 = vsub.s32 0, %v1127
    %v1129 = vrot.slane %v1124, %v1128
    %v1139 = vunpack.c.l.b16 %v1116
    %v1140 = vunpack.c.l.b16 %v1117
    %v1141 = vunpack.c.l.b16 %v1118
    %v1142 = vunpack.c.l.b16 %v1119
    %v1143 = vunpack.c.l.b16 %v1120
    %v1144 = vunpack.c.l.b16 %v1121
    %v1145 = vunpack.c.l.b16 %v1122
    %v1146 = vunpack.c.l.b16 %v1123
    %v1147 = vpack.c.b16 %v1140, %v1139
    %v1148 = vpack.c.b16 %v1142, %v1141
    %v1149 = vpack.c.b16 %v1144, %v1143
    %v1150 = vpack.c.b16 %v1146, %v1145
    %v1156 = vsel %vm236, %v1115, 0
    %1158 = vmatprep.subr.bf16.mxu0 0
    %1159 = vmatpush1.bf16.msra.mxu0 %v1147
    %1160 = vmatprep.subr.bf16.mxu0 0
    %1161 = vmatpush1.bf16.msra.mxu0 %v1148
    %1162 = vmatprep.subr.bf16.mxu0 0
    %1163 = vmatpush1.bf16.msra.mxu0 %v1149
    %1164 = vmatprep.subr.bf16.mxu0 0
    %1165 = vmatpush1.bf16.msra.mxu0 %v1150
    %1166 = vmatprep.subr.bf16.mxu0 0
    %1167 = vmatpush1.bf16.msra.mxu0 0
    %1168 = vmatprep.subr.bf16.mxu0 0
    %1169 = vmatpush1.bf16.msra.mxu0 0
    %1170 = vmatprep.subr.bf16.mxu0 0
    %1171 = vmatpush1.bf16.msra.mxu0 0
    %1172 = vmatprep.subr.bf16.mxu0 0
    %1173 = vmatpush1.bf16.msra.mxu0 0
    %1174 = vmatprep.subr.bf16.mxu0 0
    %1175 = vmatpush1.bf16.msra.mxu0 0
    %1176 = vmatprep.subr.bf16.mxu0 0
    %1177 = vmatpush1.bf16.msra.mxu0 0
    %1178 = vmatprep.subr.bf16.mxu0 0
    %1179 = vmatpush1.bf16.msra.mxu0 0
    %1180 = vmatprep.subr.bf16.mxu0 0
    %1181 = vmatpush1.bf16.msra.mxu0 0
    %1182 = vmatprep.subr.bf16.mxu0 0
    %1183 = vmatpush1.bf16.msra.mxu0 0
    %1184 = vmatprep.subr.bf16.mxu0 0
    %1185 = vmatpush1.bf16.msra.mxu0 0
    %1186 = vmatprep.subr.bf16.mxu0 0
    %1187 = vmatpush1.bf16.msra.mxu0 0
    %1188 = vmatprep.subr.bf16.mxu0 0
    %1189 = vmatpush1.bf16.msra.mxu0 0
    %1190 = vmatprep.mubr.bf16.mxu0 0
    %1191 = vmatmul.mubr.bf16.gmra.mrb[0].mxu0 %v1156
    %v1192 = vpop.f32.mrb[0].mxu0
    %v1193 = vadd.f32 %v1129, %v1192
    %v1194 = vpop.f32.mrb[0].mxu0
    %v1195 = vpop.f32.mrb[0].mxu0
    %v1196 = vpop.f32.mrb[0].mxu0
    %1197 = vdwg.mxu0
    %v1198 = vmax.f32 %v1193, 0.0
    %v1199 = vpack.c.bf16 %v1198, %v1198
    %v1200 = vld [vmem:[#allocation9] sm:$0xf]
    %v1201 = vld [vmem:[#allocation9 + $0x4] sm:$0xf]
    %v1202 = vld [vmem:[#allocation9 + $0x8] sm:$0xf]
    %v1203 = vld [vmem:[#allocation9 + $0xc] sm:$0xf]
    %v1204 = vld [vmem:[#allocation9 + $0x10] sm:$0xf]
    %v1205 = vld [vmem:[#allocation9 + $0x14] sm:$0xf]
    %v1206 = vld [vmem:[#allocation9 + $0x18] sm:$0xf]
    %v1207 = vld [vmem:[#allocation9 + $0x1c] sm:$0xf]
    %v1208 = vld [vmem:[%s8] sm:$0x1]
    %v1210 = vlaneseq
    %v1211 = vshrl.u32 %v1210, 7
    %v1212 = vsub.s32 0, %v1211
    %v1213 = vrot.slane %v1208, %v1212
    %v1223 = vunpack.c.l.b16 %v1200
    %v1224 = vunpack.c.l.b16 %v1201
    %v1225 = vunpack.c.l.b16 %v1202
    %v1226 = vunpack.c.l.b16 %v1203
    %v1227 = vunpack.c.l.b16 %v1204
    %v1228 = vunpack.c.l.b16 %v1205
    %v1229 = vunpack.c.l.b16 %v1206
    %v1230 = vunpack.c.l.b16 %v1207
    %v1231 = vpack.c.b16 %v1224, %v1223
    %v1232 = vpack.c.b16 %v1226, %v1225
    %v1233 = vpack.c.b16 %v1228, %v1227
    %v1234 = vpack.c.b16 %v1230, %v1229
    %v1240 = vsel %vm236, %v1199, 0
    %1242 = vmatprep.subr.bf16.mxu0 0
    %1243 = vmatpush1.bf16.msra.mxu0 %v1231
    %1244 = vmatprep.subr.bf16.mxu0 0
    %1245 = vmatpush1.bf16.msra.mxu0 %v1232
    %1246 = vmatprep.subr.bf16.mxu0 0
    %1247 = vmatpush1.bf16.msra.mxu0 %v1233
    %1248 = vmatprep.subr.bf16.mxu0 0
    %1249 = vmatpush1.bf16.msra.mxu0 %v1234
    %1250 = vmatprep.subr.bf16.mxu0 0
    %1251 = vmatpush1.bf16.msra.mxu0 0
    %1252 = vmatprep.subr.bf16.mxu0 0
    %1253 = vmatpush1.bf16.msra.mxu0 0
    %1254 = vmatprep.subr.bf16.mxu0 0
    %1255 = vmatpush1.bf16.msra.mxu0 0
    %1256 = vmatprep.subr.bf16.mxu0 0
    %1257 = vmatpush1.bf16.msra.mxu0 0
    %1258 = vmatprep.subr.bf16.mxu0 0
    %1259 = vmatpush1.bf16.msra.mxu0 0
    %1260 = vmatprep.subr.bf16.mxu0 0
    %1261 = vmatpush1.bf16.msra.mxu0 0
    %1262 = vmatprep.subr.bf16.mxu0 0
    %1263 = vmatpush1.bf16.msra.mxu0 0
    %1264 = vmatprep.subr.bf16.mxu0 0
    %1265 = vmatpush1.bf16.msra.mxu0 0
    %1266 = vmatprep.subr.bf16.mxu0 0
    %1267 = vmatpush1.bf16.msra.mxu0 0
    %1268 = vmatprep.subr.bf16.mxu0 0
    %1269 = vmatpush1.bf16.msra.mxu0 0
    %1270 = vmatprep.subr.bf16.mxu0 0
    %1271 = vmatpush1.bf16.msra.mxu0 0
    %1272 = vmatprep.subr.bf16.mxu0 0
    %1273 = vmatpush1.bf16.msra.mxu0 0
    %1274 = vmatprep.mubr.bf16.mxu0 0
    %1275 = vmatmul.mubr.bf16.gmra.mrb[0].mxu0 %v1240
    %v1276 = vpop.f32.mrb[0].mxu0
    %v1277 = vadd.f32 %v1213, %v1276
    %v1278 = vpop.f32.mrb[0].mxu0
    %v1279 = vpop.f32.mrb[0].mxu0
    %v1280 = vpop.f32.mrb[0].mxu0
    %1281 = vdwg.mxu0
    %v1282 = vmax.f32 %v1277, 0.0
    %v1283 = vpack.c.bf16 %v1282, %v1282
    %v1284 = vld [vmem:[%s9] sm:$0xf]
    %v1285 = vld [vmem:[%s9 + $0x4] sm:$0xf]
    %v1286 = vld [vmem:[%s9 + $0x8] sm:$0xf]
    %v1287 = vld [vmem:[%s9 + $0xc] sm:$0xf]
    %v1288 = vld [vmem:[%s9 + $0x10] sm:$0xf]
    %v1289 = vld [vmem:[%s9 + $0x14] sm:$0xf]
    %v1290 = vld [vmem:[%s9 + $0x18] sm:$0xf]
    %v1291 = vld [vmem:[%s9 + $0x1c] sm:$0xf]
    %v1292 = vld [vmem:[#allocation6] sm:$0x1]
    %v1294 = vlaneseq
    %v1295 = vshrl.u32 %v1294, 7
    %v1296 = vsub.s32 0, %v1295
    %v1297 = vrot.slane %v1292, %v1296
    %v1307 = vunpack.c.l.b16 %v1284
    %v1308 = vunpack.c.l.b16 %v1285
    %v1309 = vunpack.c.l.b16 %v1286
    %v1310 = vunpack.c.l.b16 %v1287
    %v1311 = vunpack.c.l.b16 %v1288
    %v1312 = vunpack.c.l.b16 %v1289
    %v1313 = vunpack.c.l.b16 %v1290
    %v1314 = vunpack.c.l.b16 %v1291
    %v1315 = vpack.c.b16 %v1308, %v1307
    %v1316 = vpack.c.b16 %v1310, %v1309
    %v1317 = vpack.c.b16 %v1312, %v1311
    %v1318 = vpack.c.b16 %v1314, %v1313
    %v1324 = vsel %vm236, %v1283, 0
    %1326 = vmatprep.subr.bf16.mxu0 0
    %1327 = vmatpush1.bf16.msra.mxu0 %v1315
    %1328 = vmatprep.subr.bf16.mxu0 0
    %1329 = vmatpush1.bf16.msra.mxu0 %v1316
    %1330 = vmatprep.subr.bf16.mxu0 0
    %1331 = vmatpush1.bf16.msra.mxu0 %v1317
    %1332 = vmatprep.subr.bf16.mxu0 0
    %1333 = vmatpush1.bf16.msra.mxu0 %v1318
    %1334 = vmatprep.subr.bf16.mxu0 0
    %1335 = vmatpush1.bf16.msra.mxu0 0
    %1336 = vmatprep.subr.bf16.mxu0 0
    %1337 = vmatpush1.bf16.msra.mxu0 0
    %1338 = vmatprep.subr.bf16.mxu0 0
    %1339 = vmatpush1.bf16.msra.mxu0 0
    %1340 = vmatprep.subr.bf16.mxu0 0
    %1341 = vmatpush1.bf16.msra.mxu0 0
    %1342 = vmatprep.subr.bf16.mxu0 0
    %1343 = vmatpush1.bf16.msra.mxu0 0
    %1344 = vmatprep.subr.bf16.mxu0 0
    %1345 = vmatpush1.bf16.msra.mxu0 0
    %1346 = vmatprep.subr.bf16.mxu0 0
    %1347 = vmatpush1.bf16.msra.mxu0 0
    %1348 = vmatprep.subr.bf16.mxu0 0
    %1349 = vmatpush1.bf16.msra.mxu0 0
    %1350 = vmatprep.subr.bf16.mxu0 0
    %1351 = vmatpush1.bf16.msra.mxu0 0
    %1352 = vmatprep.subr.bf16.mxu0 0
    %1353 = vmatpush1.bf16.msra.mxu0 0
    %1354 = vmatprep.subr.bf16.mxu0 0
    %1355 = vmatpush1.bf16.msra.mxu0 0
    %1356 = vmatprep.subr.bf16.mxu0 0
    %1357 = vmatpush1.bf16.msra.mxu0 0
    %1358 = vmatprep.mubr.bf16.mxu0 0
    %1359 = vmatmul.mubr.bf16.gmra.mrb[0].mxu0 %v1324
    %v1360 = vpop.f32.mrb[0].mxu0
    %v1361 = vadd.f32 %v1297, %v1360
    %v1362 = vpop.f32.mrb[0].mxu0
    %v1363 = vpop.f32.mrb[0].mxu0
    %v1364 = vpop.f32.mrb[0].mxu0
    %1365 = vdwg.mxu0
    %v1366 = vxor.u32 %v1361, 2147483648
    %v1367 = vmul.f32 %v1366, 1.442695
    %v1368 = vpow.pop %v1367
    %v1369 = vadd.f32 %v1368, 1.0
    %v1370 = vrcp.pop %v1369
    %v1371 = vmul.f32 1.0, %v1370
    %vm1372 = vcmask 7168
    %1373 = vst.msk [vmem:[%s11] sm:$0xff] %vm1372, %v1371
    // Predicated region
    $region54: #{tpu_custom_call.1} parent=1 // pred_check
      _
    $region55: #{tpu_custom_call.1} parent=1 // pred_check_branch
      %1375 = sbr.rel (0) target = $region57
    $region56: #{tpu_custom_call.1} parent=1 // pred_region
      _
    $region57: #{tpu_custom_call.1} parent=1 // pred_fallthru
      _
    // Predicated region
    $region58: #{tpu_custom_call.1} parent=1 // pred_check
      _
    $region59: #{tpu_custom_call.1} parent=1 // pred_check_branch
      %1377 = sbr.rel (0) target = $region61
    $region60: #{tpu_custom_call.1} parent=1 // pred_region
      _
    $region61: #{tpu_custom_call.1} parent=1 // pred_fallthru
      _
    %1378 = vsyncpa [#allocation8], 1
    %1379 = vsyncpa [#allocation10], 1

</llo_original>
